<compile_context>
chip_gen: v6e
topology: v6e:2x2x1
jax: 0.10.0
libtpu: 0.0.40
codegen_flags: <defaults>
</compile_context>

<pallas_src>
import math

import jax
import jax.numpy as jnp
import numpy as np
from jax import lax
from jax.experimental import pallas as pl
from jax.experimental.pallas import tpu as pltpu  # noqa: F401  (TPU backend)

_BN_EPS = 1e-5


# -------------------------- fused Pallas kernel ------------------------------

def _make_fused_kernel(n_blocks):
    """Builds the fused whole-network kernel for `n_blocks` Block layers.

    Kernel ref order (all whole-array VMEM tiles):
      x,
      block 0:      w_x, gamma, beta                      (3 refs)
      block 1:      w_ly, w_x, gamma, beta                (4 refs)
      block i >= 2: w_ly, w_lyp, w_x, gamma, beta         (5 refs each)
      final Linear: wf_ly, wf_lyp, wf_x, bf               (4 refs)
      output
    """

    def kernel(*refs):
        x_ref = refs[0]
        o_ref = refs[-1]
        idx = 1

        x = x_ref[...]                                   # [B, Fin]
        ly = None
        ly_p = None

        def bn_relu(z, g_ref, beta_ref):
            # Training-mode BatchNorm1d (batch stats, biased var) + ReLU.
            mean = jnp.mean(z, axis=0, keepdims=True)                    # [1, F]
            var = jnp.mean((z - mean) * (z - mean), axis=0, keepdims=True)
            scale = g_ref[...] * lax.rsqrt(var + _BN_EPS)                # EUP rsqrt
            return jnp.maximum((z - mean) * scale + beta_ref[...], 0.0)

        for i in range(n_blocks):                        # unrolled in Python
            if i == 0:
                w_x, g, b = refs[idx:idx + 3]
                idx += 3
                z = jnp.dot(x, w_x[...], preferred_element_type=jnp.float32)
            elif i == 1:
                w_ly, w_x, g, b = refs[idx:idx + 4]
                idx += 4
                z = (jnp.dot(ly, w_ly[...], preferred_element_type=jnp.float32)
                     + jnp.dot(x, w_x[...], preferred_element_type=jnp.float32))
            else:
                w_ly, w_lyp, w_x, g, b = refs[idx:idx + 5]
                idx += 5
                z = (jnp.dot(ly, w_ly[...], preferred_element_type=jnp.float32)
                     + jnp.dot(ly_p, w_lyp[...], preferred_element_type=jnp.float32)
                     + jnp.dot(x, w_x[...], preferred_element_type=jnp.float32))
            # Linear bias intentionally dropped: it cancels under the
            # batch-mean subtraction of training-mode BatchNorm.
            ly = bn_relu(z, g, b)
            if i == 0:
                ly_p = ly                                # never updated (PyTorch quirk)

        wf_ly, wf_lyp, wf_x, bf = refs[idx:idx + 4]
        o_ref[...] = (
            jnp.dot(ly, wf_ly[...], preferred_element_type=jnp.float32)
            + jnp.dot(ly_p, wf_lyp[...], preferred_element_type=jnp.float32)
            + jnp.dot(x, wf_x[...], preferred_element_type=jnp.float32)
            + bf[...]
        )

    return kernel


def fully_connected_with_skips(params, x):
    """Single fused pallas_call reproducing FullyConnectedWithSkips.forward."""
    blocks = params["blocks"]
    wf, bf = params["final"]
    B, _ = x.shape
    n_out = blocks[0][0].shape[1]
    n_blocks = len(blocks)
    out_features = wf.shape[1]

    # Flatten args; pre-split weights into per-source pieces so the kernel
    # never has to materialize the concatenated activation.
    args = [x]
    for i, (w, _b, gamma, beta) in enumerate(blocks):
        if i == 0:
            pieces = (w,)
        elif i == 1:
            pieces = (w[:n_out], w[n_out:])
        else:
            pieces = (w[:n_out], w[n_out:2 * n_out], w[2 * n_out:])
        args.extend(pieces)
        args.extend((gamma, beta))
    args.extend((wf[:n_out], wf[n_out:2 * n_out], wf[2 * n_out:], bf))

    # Whole-array blocks (no grid): every operand is a single VMEM tile, so
    # the (8,128) divisibility rule is satisfied by the "full array dims" case.
    # TODO(synk): for large batch, tile B with a grid ('arbitrary' reduction
    # axis + two-phase BN stats) and pad feature dims to 128 for lane-dense
    # stores; unnecessary at these sizes (everything fits in VMEM easily).
    in_specs = [pl.BlockSpec(a.shape, lambda: (0, 0)) for a in args]

    return pl.pallas_call(
        _make_fused_kernel(n_blocks),
        out_shape=jax.ShapeDtypeStruct((B, out_features), jnp.float32),
        in_specs=in_specs,
        out_specs=pl.BlockSpec((B, out_features), lambda: (0, 0)),
    )(*args)


# -------------------------- parameter construction ---------------------------

def _init_linear(key, fan_in, fan_out):
    """Mimic torch.nn.Linear default init: U(-1/sqrt(fan_in), 1/sqrt(fan_in))."""
    k = 1.0 / math.sqrt(fan_in)
    kw, kb = jax.random.split(key)
    w = jax.random.uniform(kw, (fan_in, fan_out), jnp.float32, -k, k)
    b = jax.random.uniform(kb, (1, fan_out), jnp.float32, -k, k)
    return w, b


def init_params(key, input_features, output_features, layers, width):
    n_out = (width - input_features) // 2
    n_in = 2 * n_out + input_features

    # Block input widths, in order (layers + 1 blocks total).
    block_in = [input_features, n_out + input_features] + [n_in] * (layers - 1)

    params = {"blocks": []}
    for fin in block_in:
        key, sub = jax.random.split(key)
        w, b = _init_linear(sub, fin, n_out)
        gamma = jnp.ones((1, n_out), jnp.float32)   # BN weight
        beta = jnp.zeros((1, n_out), jnp.float32)   # BN bias
        params["blocks"].append((w, b, gamma, beta))

    key, sub = jax.random.split(key)
    wf, bf = _init_linear(sub, n_in, output_features)
    params["final"] = (wf, bf)
    return params


# -------------------------- pure-JAX reference --------------------------------

def _ref_block(x, w, b, gamma, beta):
    z = x @ w + b                       # reference keeps the bias (it cancels)
    mean = jnp.mean(z, axis=0, keepdims=True)
    var = jnp.mean((z - mean) ** 2, axis=0, keepdims=True)
    y = (z - mean) / jnp.sqrt(var + _BN_EPS) * gamma + beta
    return jnp.maximum(y, 0.0)


def _ref_forward(params, x):
    blocks = params["blocks"]
    ly = _ref_block(x, *blocks[0])
    y = jnp.concatenate([ly, x], axis=-1)
    ly_p = ly
    for blk in blocks[1:]:
        ly = _ref_block(y, *blk)
        y = jnp.concatenate([ly, ly_p, x], axis=-1)
    wf, bf = params["final"]
    return y @ wf + bf


# -------------------------- main -----------------------------------------------

if __name__ == "__main__":
    input_features = 16
    output_features = 8
    layers = 3
    width = 64
    batch = 8

    key = jax.random.PRNGKey(0)
    key, kx, kp = jax.random.split(key, 3)

    x = jax.random.normal(kx, (batch, input_features), jnp.float32)
    params = init_params(kp, input_features, output_features, layers, width)

    fwd = jax.jit(fully_connected_with_skips)
    out = fwd(params, x)
    out = jax.block_until_ready(out)

    ref = _ref_forward(params, x)
    np.testing.assert_allclose(np.asarray(out), np.asarray(ref), atol=1e-3, rtol=1e-3)

    print("KERNEL_OK")
</pallas_src>

<mosaic_0001>
module attributes {stable_mosaic.version = 11 : i64} {
  func.func @kernel(%arg0: memref<8x16xf32, #tpu.memory_space<vmem>>, %arg1: memref<16x24xf32, #tpu.memory_space<vmem>>, %arg2: memref<1x24xf32, #tpu.memory_space<vmem>>, %arg3: memref<1x24xf32, #tpu.memory_space<vmem>>, %arg4: memref<24x24xf32, #tpu.memory_space<vmem>>, %arg5: memref<16x24xf32, #tpu.memory_space<vmem>>, %arg6: memref<1x24xf32, #tpu.memory_space<vmem>>, %arg7: memref<1x24xf32, #tpu.memory_space<vmem>>, %arg8: memref<24x24xf32, #tpu.memory_space<vmem>>, %arg9: memref<24x24xf32, #tpu.memory_space<vmem>>, %arg10: memref<16x24xf32, #tpu.memory_space<vmem>>, %arg11: memref<1x24xf32, #tpu.memory_space<vmem>>, %arg12: memref<1x24xf32, #tpu.memory_space<vmem>>, %arg13: memref<24x24xf32, #tpu.memory_space<vmem>>, %arg14: memref<24x24xf32, #tpu.memory_space<vmem>>, %arg15: memref<16x24xf32, #tpu.memory_space<vmem>>, %arg16: memref<1x24xf32, #tpu.memory_space<vmem>>, %arg17: memref<1x24xf32, #tpu.memory_space<vmem>>, %arg18: memref<24x8xf32, #tpu.memory_space<vmem>>, %arg19: memref<24x8xf32, #tpu.memory_space<vmem>>, %arg20: memref<16x8xf32, #tpu.memory_space<vmem>>, %arg21: memref<1x8xf32, #tpu.memory_space<vmem>>, %arg22: memref<8x8xf32, #tpu.memory_space<vmem>>) attributes {dimension_semantics = [], scalar_prefetch = 0 : i64, scratch_operands = 0 : i64, tpu.core_type = #tpu.core_type<tc>} {
    %c0 = arith.constant 0 : index
    %c0_0 = arith.constant 0 : index
    %0 = vector.load %arg0[%c0, %c0_0] : memref<8x16xf32, #tpu.memory_space<vmem>>, vector<8x16xf32>
    %c0_1 = arith.constant 0 : index
    %c0_2 = arith.constant 0 : index
    %1 = vector.load %arg1[%c0_1, %c0_2] : memref<16x24xf32, #tpu.memory_space<vmem>>, vector<16x24xf32>
    %cst = arith.constant dense<0.000000e+00> : vector<8x24xf32>
    %2 = tpu.matmul %0, %1, %cst {dimension_numbers = #tpu.dot_dimension_numbers<[1], [0], [0], [1], [0, 0, 1, 1], [], []>} : vector<8x16xf32>, vector<16x24xf32>, vector<8x24xf32> -> vector<8x24xf32>
    %cst_3 = arith.constant dense<0.000000e+00> : vector<24xf32>
    %3 = vector.multi_reduction <add>, %2, %cst_3 [0] : vector<8x24xf32> to vector<24xf32>
    %4 = vector.shape_cast %3 : vector<24xf32> to vector<1x24xf32>
    %cst_4 = arith.constant 8.000000e+00 : f32
    %5 = vector.broadcast %cst_4 : f32 to vector<1x24xf32>
    %6 = arith.divf %4, %5 : vector<1x24xf32>
    %7 = vector.broadcast %6 : vector<1x24xf32> to vector<8x24xf32>
    %8 = arith.subf %2, %7 : vector<8x24xf32>
    %9 = vector.broadcast %6 : vector<1x24xf32> to vector<8x24xf32>
    %10 = arith.subf %2, %9 : vector<8x24xf32>
    %11 = arith.mulf %8, %10 : vector<8x24xf32>
    %cst_5 = arith.constant dense<0.000000e+00> : vector<24xf32>
    %12 = vector.multi_reduction <add>, %11, %cst_5 [0] : vector<8x24xf32> to vector<24xf32>
    %13 = vector.shape_cast %12 : vector<24xf32> to vector<1x24xf32>
    %cst_6 = arith.constant 8.000000e+00 : f32
    %14 = vector.broadcast %cst_6 : f32 to vector<1x24xf32>
    %15 = arith.divf %13, %14 : vector<1x24xf32>
    %c0_7 = arith.constant 0 : index
    %c0_8 = arith.constant 0 : index
    %16 = vector.load %arg2[%c0_7, %c0_8] : memref<1x24xf32, #tpu.memory_space<vmem>>, vector<1x24xf32>
    %cst_9 = arith.constant 9.99999974E-6 : f32
    %17 = vector.broadcast %cst_9 : f32 to vector<1x24xf32>
    %18 = arith.addf %15, %17 : vector<1x24xf32>
    %19 = math.rsqrt %18 : vector<1x24xf32>
    %20 = arith.mulf %16, %19 : vector<1x24xf32>
    %21 = vector.broadcast %6 : vector<1x24xf32> to vector<8x24xf32>
    %22 = arith.subf %2, %21 : vector<8x24xf32>
    %23 = vector.broadcast %20 : vector<1x24xf32> to vector<8x24xf32>
    %24 = arith.mulf %22, %23 : vector<8x24xf32>
    %c0_10 = arith.constant 0 : index
    %c0_11 = arith.constant 0 : index
    %25 = vector.load %arg3[%c0_10, %c0_11] : memref<1x24xf32, #tpu.memory_space<vmem>>, vector<1x24xf32>
    %26 = vector.broadcast %25 : vector<1x24xf32> to vector<8x24xf32>
    %27 = arith.addf %24, %26 : vector<8x24xf32>
    %cst_12 = arith.constant 0.000000e+00 : f32
    %28 = vector.broadcast %cst_12 : f32 to vector<8x24xf32>
    %29 = arith.maximumf %27, %28 : vector<8x24xf32>
    %c0_13 = arith.constant 0 : index
    %c0_14 = arith.constant 0 : index
    %30 = vector.load %arg4[%c0_13, %c0_14] : memref<24x24xf32, #tpu.memory_space<vmem>>, vector<24x24xf32>
    %cst_15 = arith.constant dense<0.000000e+00> : vector<8x24xf32>
    %31 = tpu.matmul %29, %30, %cst_15 {dimension_numbers = #tpu.dot_dimension_numbers<[1], [0], [0], [1], [0, 0, 1, 1], [], []>} : vector<8x24xf32>, vector<24x24xf32>, vector<8x24xf32> -> vector<8x24xf32>
    %c0_16 = arith.constant 0 : index
    %c0_17 = arith.constant 0 : index
    %32 = vector.load %arg5[%c0_16, %c0_17] : memref<16x24xf32, #tpu.memory_space<vmem>>, vector<16x24xf32>
    %cst_18 = arith.constant dense<0.000000e+00> : vector<8x24xf32>
    %33 = tpu.matmul %0, %32, %cst_18 {dimension_numbers = #tpu.dot_dimension_numbers<[1], [0], [0], [1], [0, 0, 1, 1], [], []>} : vector<8x16xf32>, vector<16x24xf32>, vector<8x24xf32> -> vector<8x24xf32>
    %34 = arith.addf %31, %33 : vector<8x24xf32>
    %cst_19 = arith.constant dense<0.000000e+00> : vector<24xf32>
    %35 = vector.multi_reduction <add>, %34, %cst_19 [0] : vector<8x24xf32> to vector<24xf32>
    %36 = vector.shape_cast %35 : vector<24xf32> to vector<1x24xf32>
    %cst_20 = arith.constant 8.000000e+00 : f32
    %37 = vector.broadcast %cst_20 : f32 to vector<1x24xf32>
    %38 = arith.divf %36, %37 : vector<1x24xf32>
    %39 = vector.broadcast %38 : vector<1x24xf32> to vector<8x24xf32>
    %40 = arith.subf %34, %39 : vector<8x24xf32>
    %41 = vector.broadcast %38 : vector<1x24xf32> to vector<8x24xf32>
    %42 = arith.subf %34, %41 : vector<8x24xf32>
    %43 = arith.mulf %40, %42 : vector<8x24xf32>
    %cst_21 = arith.constant dense<0.000000e+00> : vector<24xf32>
    %44 = vector.multi_reduction <add>, %43, %cst_21 [0] : vector<8x24xf32> to vector<24xf32>
    %45 = vector.shape_cast %44 : vector<24xf32> to vector<1x24xf32>
    %cst_22 = arith.constant 8.000000e+00 : f32
    %46 = vector.broadcast %cst_22 : f32 to vector<1x24xf32>
    %47 = arith.divf %45, %46 : vector<1x24xf32>
    %c0_23 = arith.constant 0 : index
    %c0_24 = arith.constant 0 : index
    %48 = vector.load %arg6[%c0_23, %c0_24] : memref<1x24xf32, #tpu.memory_space<vmem>>, vector<1x24xf32>
    %cst_25 = arith.constant 9.99999974E-6 : f32
    %49 = vector.broadcast %cst_25 : f32 to vector<1x24xf32>
    %50 = arith.addf %47, %49 : vector<1x24xf32>
    %51 = math.rsqrt %50 : vector<1x24xf32>
    %52 = arith.mulf %48, %51 : vector<1x24xf32>
    %53 = vector.broadcast %38 : vector<1x24xf32> to vector<8x24xf32>
    %54 = arith.subf %34, %53 : vector<8x24xf32>
    %55 = vector.broadcast %52 : vector<1x24xf32> to vector<8x24xf32>
    %56 = arith.mulf %54, %55 : vector<8x24xf32>
    %c0_26 = arith.constant 0 : index
    %c0_27 = arith.constant 0 : index
    %57 = vector.load %arg7[%c0_26, %c0_27] : memref<1x24xf32, #tpu.memory_space<vmem>>, vector<1x24xf32>
    %58 = vector.broadcast %57 : vector<1x24xf32> to vector<8x24xf32>
    %59 = arith.addf %56, %58 : vector<8x24xf32>
    %cst_28 = arith.constant 0.000000e+00 : f32
    %60 = vector.broadcast %cst_28 : f32 to vector<8x24xf32>
    %61 = arith.maximumf %59, %60 : vector<8x24xf32>
    %c0_29 = arith.constant 0 : index
    %c0_30 = arith.constant 0 : index
    %62 = vector.load %arg8[%c0_29, %c0_30] : memref<24x24xf32, #tpu.memory_space<vmem>>, vector<24x24xf32>
    %cst_31 = arith.constant dense<0.000000e+00> : vector<8x24xf32>
    %63 = tpu.matmul %61, %62, %cst_31 {dimension_numbers = #tpu.dot_dimension_numbers<[1], [0], [0], [1], [0, 0, 1, 1], [], []>} : vector<8x24xf32>, vector<24x24xf32>, vector<8x24xf32> -> vector<8x24xf32>
    %c0_32 = arith.constant 0 : index
    %c0_33 = arith.constant 0 : index
    %64 = vector.load %arg9[%c0_32, %c0_33] : memref<24x24xf32, #tpu.memory_space<vmem>>, vector<24x24xf32>
    %cst_34 = arith.constant dense<0.000000e+00> : vector<8x24xf32>
    %65 = tpu.matmul %29, %64, %cst_34 {dimension_numbers = #tpu.dot_dimension_numbers<[1], [0], [0], [1], [0, 0, 1, 1], [], []>} : vector<8x24xf32>, vector<24x24xf32>, vector<8x24xf32> -> vector<8x24xf32>
    %66 = arith.addf %63, %65 : vector<8x24xf32>
    %c0_35 = arith.constant 0 : index
    %c0_36 = arith.constant 0 : index
    %67 = vector.load %arg10[%c0_35, %c0_36] : memref<16x24xf32, #tpu.memory_space<vmem>>, vector<16x24xf32>
    %cst_37 = arith.constant dense<0.000000e+00> : vector<8x24xf32>
    %68 = tpu.matmul %0, %67, %cst_37 {dimension_numbers = #tpu.dot_dimension_numbers<[1], [0], [0], [1], [0, 0, 1, 1], [], []>} : vector<8x16xf32>, vector<16x24xf32>, vector<8x24xf32> -> vector<8x24xf32>
    %69 = arith.addf %66, %68 : vector<8x24xf32>
    %cst_38 = arith.constant dense<0.000000e+00> : vector<24xf32>
    %70 = vector.multi_reduction <add>, %69, %cst_38 [0] : vector<8x24xf32> to vector<24xf32>
    %71 = vector.shape_cast %70 : vector<24xf32> to vector<1x24xf32>
    %cst_39 = arith.constant 8.000000e+00 : f32
    %72 = vector.broadcast %cst_39 : f32 to vector<1x24xf32>
    %73 = arith.divf %71, %72 : vector<1x24xf32>
    %74 = vector.broadcast %73 : vector<1x24xf32> to vector<8x24xf32>
    %75 = arith.subf %69, %74 : vector<8x24xf32>
    %76 = vector.broadcast %73 : vector<1x24xf32> to vector<8x24xf32>
    %77 = arith.subf %69, %76 : vector<8x24xf32>
    %78 = arith.mulf %75, %77 : vector<8x24xf32>
    %cst_40 = arith.constant dense<0.000000e+00> : vector<24xf32>
    %79 = vector.multi_reduction <add>, %78, %cst_40 [0] : vector<8x24xf32> to vector<24xf32>
    %80 = vector.shape_cast %79 : vector<24xf32> to vector<1x24xf32>
    %cst_41 = arith.constant 8.000000e+00 : f32
    %81 = vector.broadcast %cst_41 : f32 to vector<1x24xf32>
    %82 = arith.divf %80, %81 : vector<1x24xf32>
    %c0_42 = arith.constant 0 : index
    %c0_43 = arith.constant 0 : index
    %83 = vector.load %arg11[%c0_42, %c0_43] : memref<1x24xf32, #tpu.memory_space<vmem>>, vector<1x24xf32>
    %cst_44 = arith.constant 9.99999974E-6 : f32
    %84 = vector.broadcast %cst_44 : f32 to vector<1x24xf32>
    %85 = arith.addf %82, %84 : vector<1x24xf32>
    %86 = math.rsqrt %85 : vector<1x24xf32>
    %87 = arith.mulf %83, %86 : vector<1x24xf32>
    %88 = vector.broadcast %73 : vector<1x24xf32> to vector<8x24xf32>
    %89 = arith.subf %69, %88 : vector<8x24xf32>
    %90 = vector.broadcast %87 : vector<1x24xf32> to vector<8x24xf32>
    %91 = arith.mulf %89, %90 : vector<8x24xf32>
    %c0_45 = arith.constant 0 : index
    %c0_46 = arith.constant 0 : index
    %92 = vector.load %arg12[%c0_45, %c0_46] : memref<1x24xf32, #tpu.memory_space<vmem>>, vector<1x24xf32>
    %93 = vector.broadcast %92 : vector<1x24xf32> to vector<8x24xf32>
    %94 = arith.addf %91, %93 : vector<8x24xf32>
    %cst_47 = arith.constant 0.000000e+00 : f32
    %95 = vector.broadcast %cst_47 : f32 to vector<8x24xf32>
    %96 = arith.maximumf %94, %95 : vector<8x24xf32>
    %c0_48 = arith.constant 0 : index
    %c0_49 = arith.constant 0 : index
    %97 = vector.load %arg13[%c0_48, %c0_49] : memref<24x24xf32, #tpu.memory_space<vmem>>, vector<24x24xf32>
    %cst_50 = arith.constant dense<0.000000e+00> : vector<8x24xf32>
    %98 = tpu.matmul %96, %97, %cst_50 {dimension_numbers = #tpu.dot_dimension_numbers<[1], [0], [0], [1], [0, 0, 1, 1], [], []>} : vector<8x24xf32>, vector<24x24xf32>, vector<8x24xf32> -> vector<8x24xf32>
    %c0_51 = arith.constant 0 : index
    %c0_52 = arith.constant 0 : index
    %99 = vector.load %arg14[%c0_51, %c0_52] : memref<24x24xf32, #tpu.memory_space<vmem>>, vector<24x24xf32>
    %cst_53 = arith.constant dense<0.000000e+00> : vector<8x24xf32>
    %100 = tpu.matmul %29, %99, %cst_53 {dimension_numbers = #tpu.dot_dimension_numbers<[1], [0], [0], [1], [0, 0, 1, 1], [], []>} : vector<8x24xf32>, vector<24x24xf32>, vector<8x24xf32> -> vector<8x24xf32>
    %101 = arith.addf %98, %100 : vector<8x24xf32>
    %c0_54 = arith.constant 0 : index
    %c0_55 = arith.constant 0 : index
    %102 = vector.load %arg15[%c0_54, %c0_55] : memref<16x24xf32, #tpu.memory_space<vmem>>, vector<16x24xf32>
    %cst_56 = arith.constant dense<0.000000e+00> : vector<8x24xf32>
    %103 = tpu.matmul %0, %102, %cst_56 {dimension_numbers = #tpu.dot_dimension_numbers<[1], [0], [0], [1], [0, 0, 1, 1], [], []>} : vector<8x16xf32>, vector<16x24xf32>, vector<8x24xf32> -> vector<8x24xf32>
    %104 = arith.addf %101, %103 : vector<8x24xf32>
    %cst_57 = arith.constant dense<0.000000e+00> : vector<24xf32>
    %105 = vector.multi_reduction <add>, %104, %cst_57 [0] : vector<8x24xf32> to vector<24xf32>
    %106 = vector.shape_cast %105 : vector<24xf32> to vector<1x24xf32>
    %cst_58 = arith.constant 8.000000e+00 : f32
    %107 = vector.broadcast %cst_58 : f32 to vector<1x24xf32>
    %108 = arith.divf %106, %107 : vector<1x24xf32>
    %109 = vector.broadcast %108 : vector<1x24xf32> to vector<8x24xf32>
    %110 = arith.subf %104, %109 : vector<8x24xf32>
    %111 = vector.broadcast %108 : vector<1x24xf32> to vector<8x24xf32>
    %112 = arith.subf %104, %111 : vector<8x24xf32>
    %113 = arith.mulf %110, %112 : vector<8x24xf32>
    %cst_59 = arith.constant dense<0.000000e+00> : vector<24xf32>
    %114 = vector.multi_reduction <add>, %113, %cst_59 [0] : vector<8x24xf32> to vector<24xf32>
    %115 = vector.shape_cast %114 : vector<24xf32> to vector<1x24xf32>
    %cst_60 = arith.constant 8.000000e+00 : f32
    %116 = vector.broadcast %cst_60 : f32 to vector<1x24xf32>
    %117 = arith.divf %115, %116 : vector<1x24xf32>
    %c0_61 = arith.constant 0 : index
    %c0_62 = arith.constant 0 : index
    %118 = vector.load %arg16[%c0_61, %c0_62] : memref<1x24xf32, #tpu.memory_space<vmem>>, vector<1x24xf32>
    %cst_63 = arith.constant 9.99999974E-6 : f32
    %119 = vector.broadcast %cst_63 : f32 to vector<1x24xf32>
    %120 = arith.addf %117, %119 : vector<1x24xf32>
    %121 = math.rsqrt %120 : vector<1x24xf32>
    %122 = arith.mulf %118, %121 : vector<1x24xf32>
    %123 = vector.broadcast %108 : vector<1x24xf32> to vector<8x24xf32>
    %124 = arith.subf %104, %123 : vector<8x24xf32>
    %125 = vector.broadcast %122 : vector<1x24xf32> to vector<8x24xf32>
    %126 = arith.mulf %124, %125 : vector<8x24xf32>
    %c0_64 = arith.constant 0 : index
    %c0_65 = arith.constant 0 : index
    %127 = vector.load %arg17[%c0_64, %c0_65] : memref<1x24xf32, #tpu.memory_space<vmem>>, vector<1x24xf32>
    %128 = vector.broadcast %127 : vector<1x24xf32> to vector<8x24xf32>
    %129 = arith.addf %126, %128 : vector<8x24xf32>
    %cst_66 = arith.constant 0.000000e+00 : f32
    %130 = vector.broadcast %cst_66 : f32 to vector<8x24xf32>
    %131 = arith.maximumf %129, %130 : vector<8x24xf32>
    %c0_67 = arith.constant 0 : index
    %c0_68 = arith.constant 0 : index
    %132 = vector.load %arg18[%c0_67, %c0_68] : memref<24x8xf32, #tpu.memory_space<vmem>>, vector<24x8xf32>
    %cst_69 = arith.constant dense<0.000000e+00> : vector<8x8xf32>
    %133 = tpu.matmul %131, %132, %cst_69 {dimension_numbers = #tpu.dot_dimension_numbers<[1], [0], [0], [1], [0, 0, 1, 1], [], []>} : vector<8x24xf32>, vector<24x8xf32>, vector<8x8xf32> -> vector<8x8xf32>
    %c0_70 = arith.constant 0 : index
    %c0_71 = arith.constant 0 : index
    %134 = vector.load %arg19[%c0_70, %c0_71] : memref<24x8xf32, #tpu.memory_space<vmem>>, vector<24x8xf32>
    %cst_72 = arith.constant dense<0.000000e+00> : vector<8x8xf32>
    %135 = tpu.matmul %29, %134, %cst_72 {dimension_numbers = #tpu.dot_dimension_numbers<[1], [0], [0], [1], [0, 0, 1, 1], [], []>} : vector<8x24xf32>, vector<24x8xf32>, vector<8x8xf32> -> vector<8x8xf32>
    %136 = arith.addf %133, %135 : vector<8x8xf32>
    %c0_73 = arith.constant 0 : index
    %c0_74 = arith.constant 0 : index
    %137 = vector.load %arg20[%c0_73, %c0_74] : memref<16x8xf32, #tpu.memory_space<vmem>>, vector<16x8xf32>
    %cst_75 = arith.constant dense<0.000000e+00> : vector<8x8xf32>
    %138 = tpu.matmul %0, %137, %cst_75 {dimension_numbers = #tpu.dot_dimension_numbers<[1], [0], [0], [1], [0, 0, 1, 1], [], []>} : vector<8x16xf32>, vector<16x8xf32>, vector<8x8xf32> -> vector<8x8xf32>
    %139 = arith.addf %136, %138 : vector<8x8xf32>
    %c0_76 = arith.constant 0 : index
    %c0_77 = arith.constant 0 : index
    %140 = vector.load %arg21[%c0_76, %c0_77] : memref<1x8xf32, #tpu.memory_space<vmem>>, vector<1x8xf32>
    %141 = vector.broadcast %140 : vector<1x8xf32> to vector<8x8xf32>
    %142 = arith.addf %139, %141 : vector<8x8xf32>
    %c0_78 = arith.constant 0 : index
    %c0_79 = arith.constant 0 : index
    %143 = vector.load %arg22[%c0_78, %c0_79] : memref<8x8xf32, #tpu.memory_space<vmem>>, vector<8x8xf32>
    tpu.vector_store %arg22[%c0_78, %c0_79], %142 {strides = array<i32>} : memref<8x8xf32, #tpu.memory_space<vmem>>, vector<8x8xf32>,
    return
  }
}

</mosaic_0001>

<llo_original>
// kernel: fully_connected_with_skips.1
$region0: #{fully_connected_with_skips.1}
  #allocation0 [shape = 'u32[]', space=smem, size = 0x4, offset = 0x4, fixed_abs, tag = 'smem constant byte address 0x4 - core index']
  #allocation1 [shape = 'u32[144,128]{1,0:T(1,128)}', space=vmem, size = 0x12000, scoped, tag = 'internal scratch']
  %s0 = inlined_call_operand.vmem [shape: f32[8,16], index: 0, kind: input, shape index: {}]
  %s1 = inlined_call_operand.vmem [shape: f32[16,24], index: 1, kind: input, shape index: {}]
  %s2 = inlined_call_operand.vmem [shape: f32[1,24], index: 2, kind: input, shape index: {}]
  %s3 = inlined_call_operand.vmem [shape: f32[1,24], index: 3, kind: input, shape index: {}]
  %s4 = inlined_call_operand.vmem [shape: f32[24,24], index: 4, kind: input, shape index: {}]
  %s5 = inlined_call_operand.vmem [shape: f32[16,24], index: 5, kind: input, shape index: {}]
  %s6 = inlined_call_operand.vmem [shape: f32[1,24], index: 6, kind: input, shape index: {}]
  %s7 = inlined_call_operand.vmem [shape: f32[1,24], index: 7, kind: input, shape index: {}]
  %s8 = inlined_call_operand.vmem [shape: f32[24,24], index: 8, kind: input, shape index: {}]
  %s9 = inlined_call_operand.vmem [shape: f32[24,24], index: 9, kind: input, shape index: {}]
  %s10 = inlined_call_operand.vmem [shape: f32[16,24], index: 10, kind: input, shape index: {}]
  %s11 = inlined_call_operand.vmem [shape: f32[1,24], index: 11, kind: input, shape index: {}]
  %s12 = inlined_call_operand.vmem [shape: f32[1,24], index: 12, kind: input, shape index: {}]
  %s13 = inlined_call_operand.vmem [shape: f32[24,24], index: 13, kind: input, shape index: {}]
  %s14 = inlined_call_operand.vmem [shape: f32[24,24], index: 14, kind: input, shape index: {}]
  %s15 = inlined_call_operand.vmem [shape: f32[16,24], index: 15, kind: input, shape index: {}]
  %s16 = inlined_call_operand.vmem [shape: f32[1,24], index: 16, kind: input, shape index: {}]
  %s17 = inlined_call_operand.vmem [shape: f32[1,24], index: 17, kind: input, shape index: {}]
  %s18 = inlined_call_operand.vmem [shape: f32[24,8], index: 18, kind: input, shape index: {}]
  %s19 = inlined_call_operand.vmem [shape: f32[24,8], index: 19, kind: input, shape index: {}]
  %s20 = inlined_call_operand.vmem [shape: f32[16,8], index: 20, kind: input, shape index: {}]
  %s21 = inlined_call_operand.vmem [shape: f32[1,8], index: 21, kind: input, shape index: {}]
  %s22 = inlined_call_operand.hbm [shape: f32[8,8], index: 22, kind: output, shape index: {}]
  %s23 = sld [smem:[#allocation0]]
  $region98: #{fully_connected_with_skips.1} parent=0
    _
  %s25 = ssub.s32 1, %s23
  %s26 = scalar_select 0, %s25, %s23
  $region1: #{fully_connected_with_skips.1} parent=0
    #allocation2 [shape = 'u8[4096]{0}', space=vmem, size = 0x1000, scoped, tag = 'output window, operand 0, single buffered']
    #allocation3 [shape = 's32[1]{0}', space=sflag, size = 0x4, scoped, tag = 'scoped memory for fully_connected_with_skips.1']
    %27 = vsyncpa [#allocation3], 0
    // Predicated region
    $region2: #{fully_connected_with_skips.1} parent=1 // pred_check
      _
    $region3: #{fully_connected_with_skips.1} parent=1 // pred_check_branch
      %29 = sbr.rel (0) target = $region5
    $region4: #{fully_connected_with_skips.1} parent=1 // pred_region
      _
    $region5: #{fully_connected_with_skips.1} parent=1 // pred_fallthru
      _
    // Predicated region
    $region6: #{fully_connected_with_skips.1} parent=1 // pred_check
      _
    $region7: #{fully_connected_with_skips.1} parent=1 // pred_check_branch
      %31 = sbr.rel (0) target = $region9
    $region8: #{fully_connected_with_skips.1} parent=1 // pred_region
      _
    $region9: #{fully_connected_with_skips.1} parent=1 // pred_fallthru
      _
    // Predicated region
    $region10: #{fully_connected_with_skips.1} parent=1 // pred_check
      _
    $region11: #{fully_connected_with_skips.1} parent=1 // pred_check_branch
      %33 = sbr.rel (0) target = $region13
    $region12: #{fully_connected_with_skips.1} parent=1 // pred_region
      _
    $region13: #{fully_connected_with_skips.1} parent=1 // pred_fallthru
      _
    // Predicated region
    $region14: #{fully_connected_with_skips.1} parent=1 // pred_check
      _
    $region15: #{fully_connected_with_skips.1} parent=1 // pred_check_branch
      %35 = sbr.rel (0) target = $region17
    $region16: #{fully_connected_with_skips.1} parent=1 // pred_region
      _
    $region17: #{fully_connected_with_skips.1} parent=1 // pred_fallthru
      _
    // Predicated region
    $region18: #{fully_connected_with_skips.1} parent=1 // pred_check
      _
    $region19: #{fully_connected_with_skips.1} parent=1 // pred_check_branch
      %37 = sbr.rel (0) target = $region21
    $region20: #{fully_connected_with_skips.1} parent=1 // pred_region
      _
    $region21: #{fully_connected_with_skips.1} parent=1 // pred_fallthru
      _
    // Predicated region
    $region22: #{fully_connected_with_skips.1} parent=1 // pred_check
      _
    $region23: #{fully_connected_with_skips.1} parent=1 // pred_check_branch
      %39 = sbr.rel (0) target = $region25
    $region24: #{fully_connected_with_skips.1} parent=1 // pred_region
      _
    $region25: #{fully_connected_with_skips.1} parent=1 // pred_fallthru
      _
    // Predicated region
    $region26: #{fully_connected_with_skips.1} parent=1 // pred_check
      _
    $region27: #{fully_connected_with_skips.1} parent=1 // pred_check_branch
      %41 = sbr.rel (0) target = $region29
    $region28: #{fully_connected_with_skips.1} parent=1 // pred_region
      _
    $region29: #{fully_connected_with_skips.1} parent=1 // pred_fallthru
      _
    // Predicated region
    $region30: #{fully_connected_with_skips.1} parent=1 // pred_check
      _
    $region31: #{fully_connected_with_skips.1} parent=1 // pred_check_branch
      %43 = sbr.rel (0) target = $region33
    $region32: #{fully_connected_with_skips.1} parent=1 // pred_region
      _
    $region33: #{fully_connected_with_skips.1} parent=1 // pred_fallthru
      _
    // Predicated region
    $region34: #{fully_connected_with_skips.1} parent=1 // pred_check
      _
    $region35: #{fully_connected_with_skips.1} parent=1 // pred_check_branch
      %45 = sbr.rel (0) target = $region37
    $region36: #{fully_connected_with_skips.1} parent=1 // pred_region
      _
    $region37: #{fully_connected_with_skips.1} parent=1 // pred_fallthru
      _
    // Predicated region
    $region38: #{fully_connected_with_skips.1} parent=1 // pred_check
      _
    $region39: #{fully_connected_with_skips.1} parent=1 // pred_check_branch
      %47 = sbr.rel (0) target = $region41
    $region40: #{fully_connected_with_skips.1} parent=1 // pred_region
      _
    $region41: #{fully_connected_with_skips.1} parent=1 // pred_fallthru
      _
    // Predicated region
    $region42: #{fully_connected_with_skips.1} parent=1 // pred_check
      _
    $region43: #{fully_connected_with_skips.1} parent=1 // pred_check_branch
      %49 = sbr.rel (0) target = $region45
    $region44: #{fully_connected_with_skips.1} parent=1 // pred_region
      _
    $region45: #{fully_connected_with_skips.1} parent=1 // pred_fallthru
      _
    // Predicated region
    $region46: #{fully_connected_with_skips.1} parent=1 // pred_check
      _
    $region47: #{fully_connected_with_skips.1} parent=1 // pred_check_branch
      %51 = sbr.rel (0) target = $region49
    $region48: #{fully_connected_with_skips.1} parent=1 // pred_region
      _
    $region49: #{fully_connected_with_skips.1} parent=1 // pred_fallthru
      _
    // Predicated region
    $region50: #{fully_connected_with_skips.1} parent=1 // pred_check
      _
    $region51: #{fully_connected_with_skips.1} parent=1 // pred_check_branch
      %53 = sbr.rel (0) target = $region53
    $region52: #{fully_connected_with_skips.1} parent=1 // pred_region
      _
    $region53: #{fully_connected_with_skips.1} parent=1 // pred_fallthru
      _
    // Predicated region
    $region54: #{fully_connected_with_skips.1} parent=1 // pred_check
      _
    $region55: #{fully_connected_with_skips.1} parent=1 // pred_check_branch
      %55 = sbr.rel (0) target = $region57
    $region56: #{fully_connected_with_skips.1} parent=1 // pred_region
      _
    $region57: #{fully_connected_with_skips.1} parent=1 // pred_fallthru
      _
    // Predicated region
    $region58: #{fully_connected_with_skips.1} parent=1 // pred_check
      _
    $region59: #{fully_connected_with_skips.1} parent=1 // pred_check_branch
      %57 = sbr.rel (0) target = $region61
    $region60: #{fully_connected_with_skips.1} parent=1 // pred_region
      _
    $region61: #{fully_connected_with_skips.1} parent=1 // pred_fallthru
      _
    // Predicated region
    $region62: #{fully_connected_with_skips.1} parent=1 // pred_check
      _
    $region63: #{fully_connected_with_skips.1} parent=1 // pred_check_branch
      %59 = sbr.rel (0) target = $region65
    $region64: #{fully_connected_with_skips.1} parent=1 // pred_region
      _
    $region65: #{fully_connected_with_skips.1} parent=1 // pred_fallthru
      _
    // Predicated region
    $region66: #{fully_connected_with_skips.1} parent=1 // pred_check
      _
    $region67: #{fully_connected_with_skips.1} parent=1 // pred_check_branch
      %61 = sbr.rel (0) target = $region69
    $region68: #{fully_connected_with_skips.1} parent=1 // pred_region
      _
    $region69: #{fully_connected_with_skips.1} parent=1 // pred_fallthru
      _
    // Predicated region
    $region70: #{fully_connected_with_skips.1} parent=1 // pred_check
      _
    $region71: #{fully_connected_with_skips.1} parent=1 // pred_check_branch
      %63 = sbr.rel (0) target = $region73
    $region72: #{fully_connected_with_skips.1} parent=1 // pred_region
      _
    $region73: #{fully_connected_with_skips.1} parent=1 // pred_fallthru
      _
    // Predicated region
    $region74: #{fully_connected_with_skips.1} parent=1 // pred_check
      _
    $region75: #{fully_connected_with_skips.1} parent=1 // pred_check_branch
      %65 = sbr.rel (0) target = $region77
    $region76: #{fully_connected_with_skips.1} parent=1 // pred_region
      _
    $region77: #{fully_connected_with_skips.1} parent=1 // pred_fallthru
      _
    // Predicated region
    $region78: #{fully_connected_with_skips.1} parent=1 // pred_check
      _
    $region79: #{fully_connected_with_skips.1} parent=1 // pred_check_branch
      %67 = sbr.rel (0) target = $region81
    $region80: #{fully_connected_with_skips.1} parent=1 // pred_region
      _
    $region81: #{fully_connected_with_skips.1} parent=1 // pred_fallthru
      _
    // Predicated region
    $region82: #{fully_connected_with_skips.1} parent=1 // pred_check
      _
    $region83: #{fully_connected_with_skips.1} parent=1 // pred_check_branch
      %69 = sbr.rel (0) target = $region85
    $region84: #{fully_connected_with_skips.1} parent=1 // pred_region
      _
    $region85: #{fully_connected_with_skips.1} parent=1 // pred_fallthru
      _
    // Predicated region
    $region86: #{fully_connected_with_skips.1} parent=1 // pred_check
      _
    $region87: #{fully_connected_with_skips.1} parent=1 // pred_check_branch
      %71 = sbr.rel (0) target = $region89
    $region88: #{fully_connected_with_skips.1} parent=1 // pred_region
      _
    $region89: #{fully_connected_with_skips.1} parent=1 // pred_fallthru
      _
    %v72 = vld [vmem:[%s0] sm:$0xff]
    %v73 = vld [vmem:[%s1] sm:$0xff]
    %v74 = vld [vmem:[%s1 + $0x8] sm:$0xff]
    %vm75 = vcmask 130048
    %v77 = vsel %vm75, %v72, 0
    %79 = vmatprep.subr.mxu0 0.0
    %80 = vmatpush1.msra.mxu0 0.0
    %81 = vmatprep.subr.mxu0 0.0
    %82 = vmatpush1.msra.mxu0 0.0
    %83 = vmatprep.subr.mxu0 0.0
    %84 = vmatpush1.msra.mxu0 0.0
    %85 = vmatprep.subr.mxu0 0.0
    %86 = vmatpush1.msra.mxu0 0.0
    %87 = vmatprep.subr.mxu0 0.0
    %88 = vmatpush1.msra.mxu0 0.0
    %89 = vmatprep.subr.mxu0 0.0
    %90 = vmatpush1.msra.mxu0 0.0
    %91 = vmatprep.subr.mxu0 0.0
    %92 = vmatpush1.msra.mxu0 0.0
    %93 = vmatprep.subr.mxu0 0.0
    %94 = vmatpush1.msra.mxu0 0.0
    %95 = vmatprep.subr.mxu0 0.0
    %96 = vmatpush1.msra.mxu0 0.0
    %97 = vmatprep.subr.mxu0 0.0
    %98 = vmatpush1.msra.mxu0 0.0
    %99 = vmatprep.subr.mxu0 0.0
    %100 = vmatpush1.msra.mxu0 0.0
    %101 = vmatprep.subr.mxu0 0.0
    %102 = vmatpush1.msra.mxu0 0.0
    %103 = vmatprep.subr.mxu0 0.0
    %104 = vmatpush1.msra.mxu0 0.0
    %105 = vmatprep.subr.mxu0 0.0
    %106 = vmatpush1.msra.mxu0 0.0
    %107 = vmatprep.subr.mxu0 0.0
    %108 = vmatpush1.msra.mxu0 %v74
    %109 = vmatprep.subr.mxu0 0.0
    %110 = vmatpush1.msra.mxu0 %v73
    %111 = vmatprep.subr.mxu0 0.0
    %112 = vmatpush2.msra.mxu0 0.0
    %113 = vmatprep.subr.mxu0 0.0
    %114 = vmatpush2.msra.mxu0 0.0
    %115 = vmatprep.subr.mxu0 0.0
    %116 = vmatpush2.msra.mxu0 0.0
    %117 = vmatprep.subr.mxu0 0.0
    %118 = vmatpush2.msra.mxu0 0.0
    %119 = vmatprep.subr.mxu0 0.0
    %120 = vmatpush2.msra.mxu0 0.0
    %121 = vmatprep.subr.mxu0 0.0
    %122 = vmatpush2.msra.mxu0 0.0
    %123 = vmatprep.subr.mxu0 0.0
    %124 = vmatpush2.msra.mxu0 0.0
    %125 = vmatprep.subr.mxu0 0.0
    %126 = vmatpush2.msra.mxu0 0.0
    %127 = vmatprep.subr.mxu0 0.0
    %128 = vmatpush2.msra.mxu0 0.0
    %129 = vmatprep.subr.mxu0 0.0
    %130 = vmatpush2.msra.mxu0 0.0
    %131 = vmatprep.subr.mxu0 0.0
    %132 = vmatpush2.msra.mxu0 0.0
    %133 = vmatprep.subr.mxu0 0.0
    %134 = vmatpush2.msra.mxu0 0.0
    %135 = vmatprep.subr.mxu0 0.0
    %136 = vmatpush2.msra.mxu0 0.0
    %137 = vmatprep.subr.mxu0 0.0
    %138 = vmatpush2.msra.mxu0 0.0
    %139 = vmatprep.subr.mxu0 0.0
    %140 = vmatpush2.msra.mxu0 0.0
    %141 = vmatprep.subr.mxu0 0.0
    %142 = vmatpush2.msra.mxu0 0.0
    %143 = vmatprep.mubr.f32.mxu0 0.0
    %144 = vmatmul.mubr.f32.gmra.mxu0 %v77
    %v145 = vpop.f32.mrf.mxu0
    %v146 = vadd.f32 0.0, %v145
    %v147 = vpop.f32.mrf.mxu0
    %148 = vdwg.mxu0
    %vm149 = vcmask 195584
    %v150 = vsel %vm149, %v146, 0.0
    %v151 = vrot.slane %v150, 4
    %v152 = vadd.f32 %v150, %v151
    %v153 = vrot.slane %v152, 2
    %v154 = vadd.f32 %v152, %v153
    %v155 = vrot.slane %v154, 1
    %v156 = vadd.f32 %v154, %v155
    %v157 = vrcp.pop 8.0
    %v158 = vmul.f32 %v156, %v157
    %v159 = vsub.f32 %v146, %v158
    %v160 = vmul.f32 %v159, %v159
    %v161 = vsel %vm149, %v160, 0.0
    %v162 = vrot.slane %v161, 4
    %v163 = vadd.f32 %v161, %v162
    %v164 = vrot.slane %v163, 2
    %v165 = vadd.f32 %v163, %v164
    %v166 = vrot.slane %v165, 1
    %v167 = vadd.f32 %v165, %v166
    %v168 = vmul.f32 %v167, %v157
    %v169 = vld [vmem:[%s2] sm:$0x1]
    %v170 = vadd.f32 %v168, 1e-05
    %v171 = vrsqrt.pop %v170
    %v172 = vmul.f32 %v169, %v171
    %v174 = vlaneseq
    %v175 = vshrl.u32 %v174, 7
    %v176 = vsub.s32 0, %v175
    %v177 = vrot.slane %v172, %v176
    %v179 = vmul.f32 %v159, %v177
    %v180 = vld [vmem:[%s3] sm:$0x1]
    %v182 = vlaneseq
    %v183 = vshrl.u32 %v182, 7
    %v184 = vsub.s32 0, %v183
    %v185 = vrot.slane %v180, %v184
    %v187 = vadd.f32 %v179, %v185
    %v188 = vmax.f32 %v187, 0.0
    %v189 = vld [vmem:[%s4] sm:$0xff]
    %v190 = vld [vmem:[%s4 + $0x8] sm:$0xff]
    %v191 = vld [vmem:[%s4 + $0x10] sm:$0xff]
    %v192 = vld [vmem:[%s5] sm:$0xff]
    %v193 = vld [vmem:[%s5 + $0x8] sm:$0xff]
    %194 = vmatprep.subr.mxu0 0.0
    %195 = vmatpush1.msra.mxu0 0.0
    %196 = vmatprep.subr.mxu0 0.0
    %197 = vmatpush1.msra.mxu0 0.0
    %198 = vmatprep.subr.mxu0 0.0
    %199 = vmatpush1.msra.mxu0 0.0
    %200 = vmatprep.subr.mxu0 0.0
    %201 = vmatpush1.msra.mxu0 0.0
    %202 = vmatprep.subr.mxu0 0.0
    %203 = vmatpush1.msra.mxu0 0.0
    %204 = vmatprep.subr.mxu0 0.0
    %205 = vmatpush1.msra.mxu0 0.0
    %206 = vmatprep.subr.mxu0 0.0
    %207 = vmatpush1.msra.mxu0 0.0
    %208 = vmatprep.subr.mxu0 0.0
    %209 = vmatpush1.msra.mxu0 0.0
    %210 = vmatprep.subr.mxu0 0.0
    %211 = vmatpush1.msra.mxu0 0.0
    %212 = vmatprep.subr.mxu0 0.0
    %213 = vmatpush1.msra.mxu0 0.0
    %214 = vmatprep.subr.mxu0 0.0
    %215 = vmatpush1.msra.mxu0 0.0
    %216 = vmatprep.subr.mxu0 0.0
    %217 = vmatpush1.msra.mxu0 0.0
    %218 = vmatprep.subr.mxu0 0.0
    %219 = vmatpush1.msra.mxu0 0.0
    %220 = vmatprep.subr.mxu0 0.0
    %221 = vmatpush1.msra.mxu0 0.0
    %222 = vmatprep.subr.mxu0 0.0
    %223 = vmatpush1.msra.mxu0 %v193
    %224 = vmatprep.subr.mxu0 0.0
    %225 = vmatpush1.msra.mxu0 %v192
    %226 = vmatprep.subr.mxu0 0.0
    %227 = vmatpush2.msra.mxu0 0.0
    %228 = vmatprep.subr.mxu0 0.0
    %229 = vmatpush2.msra.mxu0 0.0
    %230 = vmatprep.subr.mxu0 0.0
    %231 = vmatpush2.msra.mxu0 0.0
    %232 = vmatprep.subr.mxu0 0.0
    %233 = vmatpush2.msra.mxu0 0.0
    %234 = vmatprep.subr.mxu0 0.0
    %235 = vmatpush2.msra.mxu0 0.0
    %236 = vmatprep.subr.mxu0 0.0
    %237 = vmatpush2.msra.mxu0 0.0
    %238 = vmatprep.subr.mxu0 0.0
    %239 = vmatpush2.msra.mxu0 0.0
    %240 = vmatprep.subr.mxu0 0.0
    %241 = vmatpush2.msra.mxu0 0.0
    %242 = vmatprep.subr.mxu0 0.0
    %243 = vmatpush2.msra.mxu0 0.0
    %244 = vmatprep.subr.mxu0 0.0
    %245 = vmatpush2.msra.mxu0 0.0
    %246 = vmatprep.subr.mxu0 0.0
    %247 = vmatpush2.msra.mxu0 0.0
    %248 = vmatprep.subr.mxu0 0.0
    %249 = vmatpush2.msra.mxu0 0.0
    %250 = vmatprep.subr.mxu0 0.0
    %251 = vmatpush2.msra.mxu0 0.0
    %252 = vmatprep.subr.mxu0 0.0
    %253 = vmatpush2.msra.mxu0 0.0
    %254 = vmatprep.subr.mxu0 0.0
    %255 = vmatpush2.msra.mxu0 0.0
    %256 = vmatprep.subr.mxu0 0.0
    %257 = vmatpush2.msra.mxu0 0.0
    %258 = vmatprep.mubr.f32.mxu0 0.0
    %259 = vmatmul.mubr.f32.gmra.mxu0 %v77
    %v260 = vpop.f32.mrf.mxu0
    %v261 = vadd.f32 0.0, %v260
    %v262 = vpop.f32.mrf.mxu0
    %263 = vdwg.mxu0
    %v265 = vsel %vm149, %v188, 0
    %267 = vmatprep.subr.mxu0 0.0
    %268 = vmatpush1.msra.mxu0 0.0
    %269 = vmatprep.subr.mxu0 0.0
    %270 = vmatpush1.msra.mxu0 0.0
    %271 = vmatprep.subr.mxu0 0.0
    %272 = vmatpush1.msra.mxu0 0.0
    %273 = vmatprep.subr.mxu0 0.0
    %274 = vmatpush1.msra.mxu0 0.0
    %275 = vmatprep.subr.mxu0 0.0
    %276 = vmatpush1.msra.mxu0 0.0
    %277 = vmatprep.subr.mxu0 0.0
    %278 = vmatpush1.msra.mxu0 0.0
    %279 = vmatprep.subr.mxu0 0.0
    %280 = vmatpush1.msra.mxu0 0.0
    %281 = vmatprep.subr.mxu0 0.0
    %282 = vmatpush1.msra.mxu0 0.0
    %283 = vmatprep.subr.mxu0 0.0
    %284 = vmatpush1.msra.mxu0 0.0
    %285 = vmatprep.subr.mxu0 0.0
    %286 = vmatpush1.msra.mxu0 0.0
    %287 = vmatprep.subr.mxu0 0.0
    %288 = vmatpush1.msra.mxu0 0.0
    %289 = vmatprep.subr.mxu0 0.0
    %290 = vmatpush1.msra.mxu0 0.0
    %291 = vmatprep.subr.mxu0 0.0
    %292 = vmatpush1.msra.mxu0 0.0
    %293 = vmatprep.subr.mxu0 0.0
    %294 = vmatpush1.msra.mxu0 %v191
    %295 = vmatprep.subr.mxu0 0.0
    %296 = vmatpush1.msra.mxu0 %v190
    %297 = vmatprep.subr.mxu0 0.0
    %298 = vmatpush1.msra.mxu0 %v189
    %299 = vmatprep.subr.mxu0 0.0
    %300 = vmatpush2.msra.mxu0 0.0
    %301 = vmatprep.subr.mxu0 0.0
    %302 = vmatpush2.msra.mxu0 0.0
    %303 = vmatprep.subr.mxu0 0.0
    %304 = vmatpush2.msra.mxu0 0.0
    %305 = vmatprep.subr.mxu0 0.0
    %306 = vmatpush2.msra.mxu0 0.0
    %307 = vmatprep.subr.mxu0 0.0
    %308 = vmatpush2.msra.mxu0 0.0
    %309 = vmatprep.subr.mxu0 0.0
    %310 = vmatpush2.msra.mxu0 0.0
    %311 = vmatprep.subr.mxu0 0.0
    %312 = vmatpush2.msra.mxu0 0.0
    %313 = vmatprep.subr.mxu0 0.0
    %314 = vmatpush2.msra.mxu0 0.0
    %315 = vmatprep.subr.mxu0 0.0
    %316 = vmatpush2.msra.mxu0 0.0
    %317 = vmatprep.subr.mxu0 0.0
    %318 = vmatpush2.msra.mxu0 0.0
    %319 = vmatprep.subr.mxu0 0.0
    %320 = vmatpush2.msra.mxu0 0.0
    %321 = vmatprep.subr.mxu0 0.0
    %322 = vmatpush2.msra.mxu0 0.0
    %323 = vmatprep.subr.mxu0 0.0
    %324 = vmatpush2.msra.mxu0 0.0
    %325 = vmatprep.subr.mxu0 0.0
    %326 = vmatpush2.msra.mxu0 0.0
    %327 = vmatprep.subr.mxu0 0.0
    %328 = vmatpush2.msra.mxu0 0.0
    %329 = vmatprep.subr.mxu0 0.0
    %330 = vmatpush2.msra.mxu0 0.0
    %331 = vmatprep.mubr.f32.mxu0 0.0
    %332 = vmatmul.mubr.f32.gmra.mxu0 %v265
    %v333 = vpop.f32.mrf.mxu0
    %v334 = vadd.f32 %v261, %v333
    %v335 = vpop.f32.mrf.mxu0
    %336 = vdwg.mxu0
    %v337 = vsel %vm149, %v334, 0.0
    %v338 = vrot.slane %v337, 4
    %v339 = vadd.f32 %v337, %v338
    %v340 = vrot.slane %v339, 2
    %v341 = vadd.f32 %v339, %v340
    %v342 = vrot.slane %v341, 1
    %v343 = vadd.f32 %v341, %v342
    %v344 = vmul.f32 %v343, %v157
    %v345 = vsub.f32 %v334, %v344
    %v346 = vmul.f32 %v345, %v345
    %v347 = vsel %vm149, %v346, 0.0
    %v348 = vrot.slane %v347, 4
    %v349 = vadd.f32 %v347, %v348
    %v350 = vrot.slane %v349, 2
    %v351 = vadd.f32 %v349, %v350
    %v352 = vrot.slane %v351, 1
    %v353 = vadd.f32 %v351, %v352
    %v354 = vmul.f32 %v353, %v157
    %v355 = vld [vmem:[%s6] sm:$0x1]
    %v356 = vadd.f32 %v354, 1e-05
    %v357 = vrsqrt.pop %v356
    %v358 = vmul.f32 %v355, %v357
    %v360 = vlaneseq
    %v361 = vshrl.u32 %v360, 7
    %v362 = vsub.s32 0, %v361
    %v363 = vrot.slane %v358, %v362
    %v365 = vmul.f32 %v345, %v363
    %v366 = vld [vmem:[%s7] sm:$0x1]
    %v368 = vlaneseq
    %v369 = vshrl.u32 %v368, 7
    %v370 = vsub.s32 0, %v369
    %v371 = vrot.slane %v366, %v370
    %v373 = vadd.f32 %v365, %v371
    %v374 = vmax.f32 %v373, 0.0
    %v375 = vld [vmem:[%s8] sm:$0xff]
    %v376 = vld [vmem:[%s8 + $0x8] sm:$0xff]
    %v377 = vld [vmem:[%s8 + $0x10] sm:$0xff]
    %v378 = vld [vmem:[%s9] sm:$0xff]
    %v379 = vld [vmem:[%s9 + $0x8] sm:$0xff]
    %v380 = vld [vmem:[%s9 + $0x10] sm:$0xff]
    %381 = vmatprep.subr.mxu0 0.0
    %382 = vmatpush1.msra.mxu0 0.0
    %383 = vmatprep.subr.mxu0 0.0
    %384 = vmatpush1.msra.mxu0 0.0
    %385 = vmatprep.subr.mxu0 0.0
    %386 = vmatpush1.msra.mxu0 0.0
    %387 = vmatprep.subr.mxu0 0.0
    %388 = vmatpush1.msra.mxu0 0.0
    %389 = vmatprep.subr.mxu0 0.0
    %390 = vmatpush1.msra.mxu0 0.0
    %391 = vmatprep.subr.mxu0 0.0
    %392 = vmatpush1.msra.mxu0 0.0
    %393 = vmatprep.subr.mxu0 0.0
    %394 = vmatpush1.msra.mxu0 0.0
    %395 = vmatprep.subr.mxu0 0.0
    %396 = vmatpush1.msra.mxu0 0.0
    %397 = vmatprep.subr.mxu0 0.0
    %398 = vmatpush1.msra.mxu0 0.0
    %399 = vmatprep.subr.mxu0 0.0
    %400 = vmatpush1.msra.mxu0 0.0
    %401 = vmatprep.subr.mxu0 0.0
    %402 = vmatpush1.msra.mxu0 0.0
    %403 = vmatprep.subr.mxu0 0.0
    %404 = vmatpush1.msra.mxu0 0.0
    %405 = vmatprep.subr.mxu0 0.0
    %406 = vmatpush1.msra.mxu0 0.0
    %407 = vmatprep.subr.mxu0 0.0
    %408 = vmatpush1.msra.mxu0 %v380
    %409 = vmatprep.subr.mxu0 0.0
    %410 = vmatpush1.msra.mxu0 %v379
    %411 = vmatprep.subr.mxu0 0.0
    %412 = vmatpush1.msra.mxu0 %v378
    %413 = vmatprep.subr.mxu0 0.0
    %414 = vmatpush2.msra.mxu0 0.0
    %415 = vmatprep.subr.mxu0 0.0
    %416 = vmatpush2.msra.mxu0 0.0
    %417 = vmatprep.subr.mxu0 0.0
    %418 = vmatpush2.msra.mxu0 0.0
    %419 = vmatprep.subr.mxu0 0.0
    %420 = vmatpush2.msra.mxu0 0.0
    %421 = vmatprep.subr.mxu0 0.0
    %422 = vmatpush2.msra.mxu0 0.0
    %423 = vmatprep.subr.mxu0 0.0
    %424 = vmatpush2.msra.mxu0 0.0
    %425 = vmatprep.subr.mxu0 0.0
    %426 = vmatpush2.msra.mxu0 0.0
    %427 = vmatprep.subr.mxu0 0.0
    %428 = vmatpush2.msra.mxu0 0.0
    %429 = vmatprep.subr.mxu0 0.0
    %430 = vmatpush2.msra.mxu0 0.0
    %431 = vmatprep.subr.mxu0 0.0
    %432 = vmatpush2.msra.mxu0 0.0
    %433 = vmatprep.subr.mxu0 0.0
    %434 = vmatpush2.msra.mxu0 0.0
    %435 = vmatprep.subr.mxu0 0.0
    %436 = vmatpush2.msra.mxu0 0.0
    %437 = vmatprep.subr.mxu0 0.0
    %438 = vmatpush2.msra.mxu0 0.0
    %439 = vmatprep.subr.mxu0 0.0
    %440 = vmatpush2.msra.mxu0 0.0
    %441 = vmatprep.subr.mxu0 0.0
    %442 = vmatpush2.msra.mxu0 0.0
    %443 = vmatprep.subr.mxu0 0.0
    %444 = vmatpush2.msra.mxu0 0.0
    %445 = vmatprep.mubr.f32.mxu0 0.0
    %446 = vmatmul.mubr.f32.gmra.mxu0 %v265
    %v447 = vpop.f32.mrf.mxu0
    %v448 = vadd.f32 0.0, %v447
    %v449 = vpop.f32.mrf.mxu0
    %450 = vdwg.mxu0
    %v452 = vsel %vm149, %v374, 0
    %454 = vmatprep.subr.mxu0 0.0
    %455 = vmatpush1.msra.mxu0 0.0
    %456 = vmatprep.subr.mxu0 0.0
    %457 = vmatpush1.msra.mxu0 0.0
    %458 = vmatprep.subr.mxu0 0.0
    %459 = vmatpush1.msra.mxu0 0.0
    %460 = vmatprep.subr.mxu0 0.0
    %461 = vmatpush1.msra.mxu0 0.0
    %462 = vmatprep.subr.mxu0 0.0
    %463 = vmatpush1.msra.mxu0 0.0
    %464 = vmatprep.subr.mxu0 0.0
    %465 = vmatpush1.msra.mxu0 0.0
    %466 = vmatprep.subr.mxu0 0.0
    %467 = vmatpush1.msra.mxu0 0.0
    %468 = vmatprep.subr.mxu0 0.0
    %469 = vmatpush1.msra.mxu0 0.0
    %470 = vmatprep.subr.mxu0 0.0
    %471 = vmatpush1.msra.mxu0 0.0
    %472 = vmatprep.subr.mxu0 0.0
    %473 = vmatpush1.msra.mxu0 0.0
    %474 = vmatprep.subr.mxu0 0.0
    %475 = vmatpush1.msra.mxu0 0.0
    %476 = vmatprep.subr.mxu0 0.0
    %477 = vmatpush1.msra.mxu0 0.0
    %478 = vmatprep.subr.mxu0 0.0
    %479 = vmatpush1.msra.mxu0 0.0
    %480 = vmatprep.subr.mxu0 0.0
    %481 = vmatpush1.msra.mxu0 %v377
    %482 = vmatprep.subr.mxu0 0.0
    %483 = vmatpush1.msra.mxu0 %v376
    %484 = vmatprep.subr.mxu0 0.0
    %485 = vmatpush1.msra.mxu0 %v375
    %486 = vmatprep.subr.mxu0 0.0
    %487 = vmatpush2.msra.mxu0 0.0
    %488 = vmatprep.subr.mxu0 0.0
    %489 = vmatpush2.msra.mxu0 0.0
    %490 = vmatprep.subr.mxu0 0.0
    %491 = vmatpush2.msra.mxu0 0.0
    %492 = vmatprep.subr.mxu0 0.0
    %493 = vmatpush2.msra.mxu0 0.0
    %494 = vmatprep.subr.mxu0 0.0
    %495 = vmatpush2.msra.mxu0 0.0
    %496 = vmatprep.subr.mxu0 0.0
    %497 = vmatpush2.msra.mxu0 0.0
    %498 = vmatprep.subr.mxu0 0.0
    %499 = vmatpush2.msra.mxu0 0.0
    %500 = vmatprep.subr.mxu0 0.0
    %501 = vmatpush2.msra.mxu0 0.0
    %502 = vmatprep.subr.mxu0 0.0
    %503 = vmatpush2.msra.mxu0 0.0
    %504 = vmatprep.subr.mxu0 0.0
    %505 = vmatpush2.msra.mxu0 0.0
    %506 = vmatprep.subr.mxu0 0.0
    %507 = vmatpush2.msra.mxu0 0.0
    %508 = vmatprep.subr.mxu0 0.0
    %509 = vmatpush2.msra.mxu0 0.0
    %510 = vmatprep.subr.mxu0 0.0
    %511 = vmatpush2.msra.mxu0 0.0
    %512 = vmatprep.subr.mxu0 0.0
    %513 = vmatpush2.msra.mxu0 0.0
    %514 = vmatprep.subr.mxu0 0.0
    %515 = vmatpush2.msra.mxu0 0.0
    %516 = vmatprep.subr.mxu0 0.0
    %517 = vmatpush2.msra.mxu0 0.0
    %518 = vmatprep.mubr.f32.mxu0 0.0
    %519 = vmatmul.mubr.f32.gmra.mxu0 %v452
    %v520 = vpop.f32.mrf.mxu0
    %v521 = vadd.f32 %v448, %v520
    %v522 = vpop.f32.mrf.mxu0
    %523 = vdwg.mxu0
    %v524 = vld [vmem:[%s10] sm:$0xff]
    %v525 = vld [vmem:[%s10 + $0x8] sm:$0xff]
    %526 = vmatprep.subr.mxu0 0.0
    %527 = vmatpush1.msra.mxu0 0.0
    %528 = vmatprep.subr.mxu0 0.0
    %529 = vmatpush1.msra.mxu0 0.0
    %530 = vmatprep.subr.mxu0 0.0
    %531 = vmatpush1.msra.mxu0 0.0
    %532 = vmatprep.subr.mxu0 0.0
    %533 = vmatpush1.msra.mxu0 0.0
    %534 = vmatprep.subr.mxu0 0.0
    %535 = vmatpush1.msra.mxu0 0.0
    %536 = vmatprep.subr.mxu0 0.0
    %537 = vmatpush1.msra.mxu0 0.0
    %538 = vmatprep.subr.mxu0 0.0
    %539 = vmatpush1.msra.mxu0 0.0
    %540 = vmatprep.subr.mxu0 0.0
    %541 = vmatpush1.msra.mxu0 0.0
    %542 = vmatprep.subr.mxu0 0.0
    %543 = vmatpush1.msra.mxu0 0.0
    %544 = vmatprep.subr.mxu0 0.0
    %545 = vmatpush1.msra.mxu0 0.0
    %546 = vmatprep.subr.mxu0 0.0
    %547 = vmatpush1.msra.mxu0 0.0
    %548 = vmatprep.subr.mxu0 0.0
    %549 = vmatpush1.msra.mxu0 0.0
    %550 = vmatprep.subr.mxu0 0.0
    %551 = vmatpush1.msra.mxu0 0.0
    %552 = vmatprep.subr.mxu0 0.0
    %553 = vmatpush1.msra.mxu0 0.0
    %554 = vmatprep.subr.mxu0 0.0
    %555 = vmatpush1.msra.mxu0 %v525
    %556 = vmatprep.subr.mxu0 0.0
    %557 = vmatpush1.msra.mxu0 %v524
    %558 = vmatprep.subr.mxu0 0.0
    %559 = vmatpush2.msra.mxu0 0.0
    %560 = vmatprep.subr.mxu0 0.0
    %561 = vmatpush2.msra.mxu0 0.0
    %562 = vmatprep.subr.mxu0 0.0
    %563 = vmatpush2.msra.mxu0 0.0
    %564 = vmatprep.subr.mxu0 0.0
    %565 = vmatpush2.msra.mxu0 0.0
    %566 = vmatprep.subr.mxu0 0.0
    %567 = vmatpush2.msra.mxu0 0.0
    %568 = vmatprep.subr.mxu0 0.0
    %569 = vmatpush2.msra.mxu0 0.0
    %570 = vmatprep.subr.mxu0 0.0
    %571 = vmatpush2.msra.mxu0 0.0
    %572 = vmatprep.subr.mxu0 0.0
    %573 = vmatpush2.msra.mxu0 0.0
    %574 = vmatprep.subr.mxu0 0.0
    %575 = vmatpush2.msra.mxu0 0.0
    %576 = vmatprep.subr.mxu0 0.0
    %577 = vmatpush2.msra.mxu0 0.0
    %578 = vmatprep.subr.mxu0 0.0
    %579 = vmatpush2.msra.mxu0 0.0
    %580 = vmatprep.subr.mxu0 0.0
    %581 = vmatpush2.msra.mxu0 0.0
    %582 = vmatprep.subr.mxu0 0.0
    %583 = vmatpush2.msra.mxu0 0.0
    %584 = vmatprep.subr.mxu0 0.0
    %585 = vmatpush2.msra.mxu0 0.0
    %586 = vmatprep.subr.mxu0 0.0
    %587 = vmatpush2.msra.mxu0 0.0
    %588 = vmatprep.subr.mxu0 0.0
    %589 = vmatpush2.msra.mxu0 0.0
    %590 = vmatprep.mubr.f32.mxu0 0.0
    %591 = vmatmul.mubr.f32.gmra.mxu0 %v77
    %v592 = vpop.f32.mrf.mxu0
    %v593 = vadd.f32 0.0, %v592
    %v594 = vpop.f32.mrf.mxu0
    %595 = vdwg.mxu0
    %v596 = vadd.f32 %v521, %v593
    %v597 = vsel %vm149, %v596, 0.0
    %v598 = vrot.slane %v597, 4
    %v599 = vadd.f32 %v597, %v598
    %v600 = vrot.slane %v599, 2
    %v601 = vadd.f32 %v599, %v600
    %v602 = vrot.slane %v601, 1
    %v603 = vadd.f32 %v601, %v602
    %v604 = vmul.f32 %v603, %v157
    %v605 = vsub.f32 %v596, %v604
    %v606 = vmul.f32 %v605, %v605
    %v607 = vsel %vm149, %v606, 0.0
    %v608 = vrot.slane %v607, 4
    %v609 = vadd.f32 %v607, %v608
    %v610 = vrot.slane %v609, 2
    %v611 = vadd.f32 %v609, %v610
    %v612 = vrot.slane %v611, 1
    %v613 = vadd.f32 %v611, %v612
    %v614 = vmul.f32 %v613, %v157
    %v615 = vld [vmem:[%s11] sm:$0x1]
    %v616 = vadd.f32 %v614, 1e-05
    %v617 = vrsqrt.pop %v616
    %v618 = vmul.f32 %v615, %v617
    %v620 = vlaneseq
    %v621 = vshrl.u32 %v620, 7
    %v622 = vsub.s32 0, %v621
    %v623 = vrot.slane %v618, %v622
    %v625 = vmul.f32 %v605, %v623
    %v626 = vld [vmem:[%s12] sm:$0x1]
    %v628 = vlaneseq
    %v629 = vshrl.u32 %v628, 7
    %v630 = vsub.s32 0, %v629
    %v631 = vrot.slane %v626, %v630
    %v633 = vadd.f32 %v625, %v631
    %v634 = vmax.f32 %v633, 0.0
    %v635 = vld [vmem:[%s13] sm:$0xff]
    %v636 = vld [vmem:[%s13 + $0x8] sm:$0xff]
    %v637 = vld [vmem:[%s13 + $0x10] sm:$0xff]
    %v638 = vld [vmem:[%s14] sm:$0xff]
    %v639 = vld [vmem:[%s14 + $0x8] sm:$0xff]
    %v640 = vld [vmem:[%s14 + $0x10] sm:$0xff]
    %641 = vmatprep.subr.mxu0 0.0
    %642 = vmatpush1.msra.mxu0 0.0
    %643 = vmatprep.subr.mxu0 0.0
    %644 = vmatpush1.msra.mxu0 0.0
    %645 = vmatprep.subr.mxu0 0.0
    %646 = vmatpush1.msra.mxu0 0.0
    %647 = vmatprep.subr.mxu0 0.0
    %648 = vmatpush1.msra.mxu0 0.0
    %649 = vmatprep.subr.mxu0 0.0
    %650 = vmatpush1.msra.mxu0 0.0
    %651 = vmatprep.subr.mxu0 0.0
    %652 = vmatpush1.msra.mxu0 0.0
    %653 = vmatprep.subr.mxu0 0.0
    %654 = vmatpush1.msra.mxu0 0.0
    %655 = vmatprep.subr.mxu0 0.0
    %656 = vmatpush1.msra.mxu0 0.0
    %657 = vmatprep.subr.mxu0 0.0
    %658 = vmatpush1.msra.mxu0 0.0
    %659 = vmatprep.subr.mxu0 0.0
    %660 = vmatpush1.msra.mxu0 0.0
    %661 = vmatprep.subr.mxu0 0.0
    %662 = vmatpush1.msra.mxu0 0.0
    %663 = vmatprep.subr.mxu0 0.0
    %664 = vmatpush1.msra.mxu0 0.0
    %665 = vmatprep.subr.mxu0 0.0
    %666 = vmatpush1.msra.mxu0 0.0
    %667 = vmatprep.subr.mxu0 0.0
    %668 = vmatpush1.msra.mxu0 %v640
    %669 = vmatprep.subr.mxu0 0.0
    %670 = vmatpush1.msra.mxu0 %v639
    %671 = vmatprep.subr.mxu0 0.0
    %672 = vmatpush1.msra.mxu0 %v638
    %673 = vmatprep.subr.mxu0 0.0
    %674 = vmatpush2.msra.mxu0 0.0
    %675 = vmatprep.subr.mxu0 0.0
    %676 = vmatpush2.msra.mxu0 0.0
    %677 = vmatprep.subr.mxu0 0.0
    %678 = vmatpush2.msra.mxu0 0.0
    %679 = vmatprep.subr.mxu0 0.0
    %680 = vmatpush2.msra.mxu0 0.0
    %681 = vmatprep.subr.mxu0 0.0
    %682 = vmatpush2.msra.mxu0 0.0
    %683 = vmatprep.subr.mxu0 0.0
    %684 = vmatpush2.msra.mxu0 0.0
    %685 = vmatprep.subr.mxu0 0.0
    %686 = vmatpush2.msra.mxu0 0.0
    %687 = vmatprep.subr.mxu0 0.0
    %688 = vmatpush2.msra.mxu0 0.0
    %689 = vmatprep.subr.mxu0 0.0
    %690 = vmatpush2.msra.mxu0 0.0
    %691 = vmatprep.subr.mxu0 0.0
    %692 = vmatpush2.msra.mxu0 0.0
    %693 = vmatprep.subr.mxu0 0.0
    %694 = vmatpush2.msra.mxu0 0.0
    %695 = vmatprep.subr.mxu0 0.0
    %696 = vmatpush2.msra.mxu0 0.0
    %697 = vmatprep.subr.mxu0 0.0
    %698 = vmatpush2.msra.mxu0 0.0
    %699 = vmatprep.subr.mxu0 0.0
    %700 = vmatpush2.msra.mxu0 0.0
    %701 = vmatprep.subr.mxu0 0.0
    %702 = vmatpush2.msra.mxu0 0.0
    %703 = vmatprep.subr.mxu0 0.0
    %704 = vmatpush2.msra.mxu0 0.0
    %705 = vmatprep.mubr.f32.mxu0 0.0
    %706 = vmatmul.mubr.f32.gmra.mxu0 %v265
    %v707 = vpop.f32.mrf.mxu0
    %v708 = vadd.f32 0.0, %v707
    %v709 = vpop.f32.mrf.mxu0
    %710 = vdwg.mxu0
    %v712 = vsel %vm149, %v634, 0
    %714 = vmatprep.subr.mxu0 0.0
    %715 = vmatpush1.msra.mxu0 0.0
    %716 = vmatprep.subr.mxu0 0.0
    %717 = vmatpush1.msra.mxu0 0.0
    %718 = vmatprep.subr.mxu0 0.0
    %719 = vmatpush1.msra.mxu0 0.0
    %720 = vmatprep.subr.mxu0 0.0
    %721 = vmatpush1.msra.mxu0 0.0
    %722 = vmatprep.subr.mxu0 0.0
    %723 = vmatpush1.msra.mxu0 0.0
    %724 = vmatprep.subr.mxu0 0.0
    %725 = vmatpush1.msra.mxu0 0.0
    %726 = vmatprep.subr.mxu0 0.0
    %727 = vmatpush1.msra.mxu0 0.0
    %728 = vmatprep.subr.mxu0 0.0
    %729 = vmatpush1.msra.mxu0 0.0
    %730 = vmatprep.subr.mxu0 0.0
    %731 = vmatpush1.msra.mxu0 0.0
    %732 = vmatprep.subr.mxu0 0.0
    %733 = vmatpush1.msra.mxu0 0.0
    %734 = vmatprep.subr.mxu0 0.0
    %735 = vmatpush1.msra.mxu0 0.0
    %736 = vmatprep.subr.mxu0 0.0
    %737 = vmatpush1.msra.mxu0 0.0
    %738 = vmatprep.subr.mxu0 0.0
    %739 = vmatpush1.msra.mxu0 0.0
    %740 = vmatprep.subr.mxu0 0.0
    %741 = vmatpush1.msra.mxu0 %v637
    %742 = vmatprep.subr.mxu0 0.0
    %743 = vmatpush1.msra.mxu0 %v636
    %744 = vmatprep.subr.mxu0 0.0
    %745 = vmatpush1.msra.mxu0 %v635
    %746 = vmatprep.subr.mxu0 0.0
    %747 = vmatpush2.msra.mxu0 0.0
    %748 = vmatprep.subr.mxu0 0.0
    %749 = vmatpush2.msra.mxu0 0.0
    %750 = vmatprep.subr.mxu0 0.0
    %751 = vmatpush2.msra.mxu0 0.0
    %752 = vmatprep.subr.mxu0 0.0
    %753 = vmatpush2.msra.mxu0 0.0
    %754 = vmatprep.subr.mxu0 0.0
    %755 = vmatpush2.msra.mxu0 0.0
    %756 = vmatprep.subr.mxu0 0.0
    %757 = vmatpush2.msra.mxu0 0.0
    %758 = vmatprep.subr.mxu0 0.0
    %759 = vmatpush2.msra.mxu0 0.0
    %760 = vmatprep.subr.mxu0 0.0
    %761 = vmatpush2.msra.mxu0 0.0
    %762 = vmatprep.subr.mxu0 0.0
    %763 = vmatpush2.msra.mxu0 0.0
    %764 = vmatprep.subr.mxu0 0.0
    %765 = vmatpush2.msra.mxu0 0.0
    %766 = vmatprep.subr.mxu0 0.0
    %767 = vmatpush2.msra.mxu0 0.0
    %768 = vmatprep.subr.mxu0 0.0
    %769 = vmatpush2.msra.mxu0 0.0
    %770 = vmatprep.subr.mxu0 0.0
    %771 = vmatpush2.msra.mxu0 0.0
    %772 = vmatprep.subr.mxu0 0.0
    %773 = vmatpush2.msra.mxu0 0.0
    %774 = vmatprep.subr.mxu0 0.0
    %775 = vmatpush2.msra.mxu0 0.0
    %776 = vmatprep.subr.mxu0 0.0
    %777 = vmatpush2.msra.mxu0 0.0
    %778 = vmatprep.mubr.f32.mxu0 0.0
    %779 = vmatmul.mubr.f32.gmra.mxu0 %v712
    %v780 = vpop.f32.mrf.mxu0
    %v781 = vadd.f32 %v708, %v780
    %v782 = vpop.f32.mrf.mxu0
    %783 = vdwg.mxu0
    %v784 = vld [vmem:[%s15] sm:$0xff]
    %v785 = vld [vmem:[%s15 + $0x8] sm:$0xff]
    %786 = vmatprep.subr.mxu0 0.0
    %787 = vmatpush1.msra.mxu0 0.0
    %788 = vmatprep.subr.mxu0 0.0
    %789 = vmatpush1.msra.mxu0 0.0
    %790 = vmatprep.subr.mxu0 0.0
    %791 = vmatpush1.msra.mxu0 0.0
    %792 = vmatprep.subr.mxu0 0.0
    %793 = vmatpush1.msra.mxu0 0.0
    %794 = vmatprep.subr.mxu0 0.0
    %795 = vmatpush1.msra.mxu0 0.0
    %796 = vmatprep.subr.mxu0 0.0
    %797 = vmatpush1.msra.mxu0 0.0
    %798 = vmatprep.subr.mxu0 0.0
    %799 = vmatpush1.msra.mxu0 0.0
    %800 = vmatprep.subr.mxu0 0.0
    %801 = vmatpush1.msra.mxu0 0.0
    %802 = vmatprep.subr.mxu0 0.0
    %803 = vmatpush1.msra.mxu0 0.0
    %804 = vmatprep.subr.mxu0 0.0
    %805 = vmatpush1.msra.mxu0 0.0
    %806 = vmatprep.subr.mxu0 0.0
    %807 = vmatpush1.msra.mxu0 0.0
    %808 = vmatprep.subr.mxu0 0.0
    %809 = vmatpush1.msra.mxu0 0.0
    %810 = vmatprep.subr.mxu0 0.0
    %811 = vmatpush1.msra.mxu0 0.0
    %812 = vmatprep.subr.mxu0 0.0
    %813 = vmatpush1.msra.mxu0 0.0
    %814 = vmatprep.subr.mxu0 0.0
    %815 = vmatpush1.msra.mxu0 %v785
    %816 = vmatprep.subr.mxu0 0.0
    %817 = vmatpush1.msra.mxu0 %v784
    %818 = vmatprep.subr.mxu0 0.0
    %819 = vmatpush2.msra.mxu0 0.0
    %820 = vmatprep.subr.mxu0 0.0
    %821 = vmatpush2.msra.mxu0 0.0
    %822 = vmatprep.subr.mxu0 0.0
    %823 = vmatpush2.msra.mxu0 0.0
    %824 = vmatprep.subr.mxu0 0.0
    %825 = vmatpush2.msra.mxu0 0.0
    %826 = vmatprep.subr.mxu0 0.0
    %827 = vmatpush2.msra.mxu0 0.0
    %828 = vmatprep.subr.mxu0 0.0
    %829 = vmatpush2.msra.mxu0 0.0
    %830 = vmatprep.subr.mxu0 0.0
    %831 = vmatpush2.msra.mxu0 0.0
    %832 = vmatprep.subr.mxu0 0.0
    %833 = vmatpush2.msra.mxu0 0.0
    %834 = vmatprep.subr.mxu0 0.0
    %835 = vmatpush2.msra.mxu0 0.0
    %836 = vmatprep.subr.mxu0 0.0
    %837 = vmatpush2.msra.mxu0 0.0
    %838 = vmatprep.subr.mxu0 0.0
    %839 = vmatpush2.msra.mxu0 0.0
    %840 = vmatprep.subr.mxu0 0.0
    %841 = vmatpush2.msra.mxu0 0.0
    %842 = vmatprep.subr.mxu0 0.0
    %843 = vmatpush2.msra.mxu0 0.0
    %844 = vmatprep.subr.mxu0 0.0
    %845 = vmatpush2.msra.mxu0 0.0
    %846 = vmatprep.subr.mxu0 0.0
    %847 = vmatpush2.msra.mxu0 0.0
    %848 = vmatprep.subr.mxu0 0.0
    %849 = vmatpush2.msra.mxu0 0.0
    %850 = vmatprep.mubr.f32.mxu0 0.0
    %851 = vmatmul.mubr.f32.gmra.mxu0 %v77
    %v852 = vpop.f32.mrf.mxu0
    %v853 = vadd.f32 0.0, %v852
    %v854 = vpop.f32.mrf.mxu0
    %855 = vdwg.mxu0
    %v856 = vadd.f32 %v781, %v853
    %v857 = vsel %vm149, %v856, 0.0
    %v858 = vrot.slane %v857, 4
    %v859 = vadd.f32 %v857, %v858
    %v860 = vrot.slane %v859, 2
    %v861 = vadd.f32 %v859, %v860
    %v862 = vrot.slane %v861, 1
    %v863 = vadd.f32 %v861, %v862
    %v864 = vmul.f32 %v863, %v157
    %v865 = vsub.f32 %v856, %v864
    %v866 = vmul.f32 %v865, %v865
    %v867 = vsel %vm149, %v866, 0.0
    %v868 = vrot.slane %v867, 4
    %v869 = vadd.f32 %v867, %v868
    %v870 = vrot.slane %v869, 2
    %v871 = vadd.f32 %v869, %v870
    %v872 = vrot.slane %v871, 1
    %v873 = vadd.f32 %v871, %v872
    %v874 = vmul.f32 %v873, %v157
    %v875 = vld [vmem:[%s16] sm:$0x1]
    %v876 = vadd.f32 %v874, 1e-05
    %v877 = vrsqrt.pop %v876
    %v878 = vmul.f32 %v875, %v877
    %v880 = vlaneseq
    %v881 = vshrl.u32 %v880, 7
    %v882 = vsub.s32 0, %v881
    %v883 = vrot.slane %v878, %v882
    %v885 = vmul.f32 %v865, %v883
    %v886 = vld [vmem:[%s17] sm:$0x1]
    %v888 = vlaneseq
    %v889 = vshrl.u32 %v888, 7
    %v890 = vsub.s32 0, %v889
    %v891 = vrot.slane %v886, %v890
    %v893 = vadd.f32 %v885, %v891
    %v894 = vmax.f32 %v893, 0.0
    %v895 = vld [vmem:[%s18] sm:$0xff]
    %v896 = vld [vmem:[%s18 + $0x8] sm:$0xff]
    %v897 = vld [vmem:[%s18 + $0x10] sm:$0xff]
    %v898 = vld [vmem:[%s19] sm:$0xff]
    %v899 = vld [vmem:[%s19 + $0x8] sm:$0xff]
    %v900 = vld [vmem:[%s19 + $0x10] sm:$0xff]
    %901 = vmatprep.subr.mxu0 0.0
    %902 = vmatpush1.msra.mxu0 0.0
    %903 = vmatprep.subr.mxu0 0.0
    %904 = vmatpush1.msra.mxu0 0.0
    %905 = vmatprep.subr.mxu0 0.0
    %906 = vmatpush1.msra.mxu0 0.0
    %907 = vmatprep.subr.mxu0 0.0
    %908 = vmatpush1.msra.mxu0 0.0
    %909 = vmatprep.subr.mxu0 0.0
    %910 = vmatpush1.msra.mxu0 0.0
    %911 = vmatprep.subr.mxu0 0.0
    %912 = vmatpush1.msra.mxu0 0.0
    %913 = vmatprep.subr.mxu0 0.0
    %914 = vmatpush1.msra.mxu0 0.0
    %915 = vmatprep.subr.mxu0 0.0
    %916 = vmatpush1.msra.mxu0 0.0
    %917 = vmatprep.subr.mxu0 0.0
    %918 = vmatpush1.msra.mxu0 0.0
    %919 = vmatprep.subr.mxu0 0.0
    %920 = vmatpush1.msra.mxu0 0.0
    %921 = vmatprep.subr.mxu0 0.0
    %922 = vmatpush1.msra.mxu0 0.0
    %923 = vmatprep.subr.mxu0 0.0
    %924 = vmatpush1.msra.mxu0 0.0
    %925 = vmatprep.subr.mxu0 0.0
    %926 = vmatpush1.msra.mxu0 0.0
    %927 = vmatprep.subr.mxu0 0.0
    %928 = vmatpush1.msra.mxu0 %v900
    %929 = vmatprep.subr.mxu0 0.0
    %930 = vmatpush1.msra.mxu0 %v899
    %931 = vmatprep.subr.mxu0 0.0
    %932 = vmatpush1.msra.mxu0 %v898
    %933 = vmatprep.subr.mxu0 0.0
    %934 = vmatpush2.msra.mxu0 0.0
    %935 = vmatprep.subr.mxu0 0.0
    %936 = vmatpush2.msra.mxu0 0.0
    %937 = vmatprep.subr.mxu0 0.0
    %938 = vmatpush2.msra.mxu0 0.0
    %939 = vmatprep.subr.mxu0 0.0
    %940 = vmatpush2.msra.mxu0 0.0
    %941 = vmatprep.subr.mxu0 0.0
    %942 = vmatpush2.msra.mxu0 0.0
    %943 = vmatprep.subr.mxu0 0.0
    %944 = vmatpush2.msra.mxu0 0.0
    %945 = vmatprep.subr.mxu0 0.0
    %946 = vmatpush2.msra.mxu0 0.0
    %947 = vmatprep.subr.mxu0 0.0
    %948 = vmatpush2.msra.mxu0 0.0
    %949 = vmatprep.subr.mxu0 0.0
    %950 = vmatpush2.msra.mxu0 0.0
    %951 = vmatprep.subr.mxu0 0.0
    %952 = vmatpush2.msra.mxu0 0.0
    %953 = vmatprep.subr.mxu0 0.0
    %954 = vmatpush2.msra.mxu0 0.0
    %955 = vmatprep.subr.mxu0 0.0
    %956 = vmatpush2.msra.mxu0 0.0
    %957 = vmatprep.subr.mxu0 0.0
    %958 = vmatpush2.msra.mxu0 0.0
    %959 = vmatprep.subr.mxu0 0.0
    %960 = vmatpush2.msra.mxu0 0.0
    %961 = vmatprep.subr.mxu0 0.0
    %962 = vmatpush2.msra.mxu0 0.0
    %963 = vmatprep.subr.mxu0 0.0
    %964 = vmatpush2.msra.mxu0 0.0
    %965 = vmatprep.mubr.f32.mxu0 0.0
    %966 = vmatmul.mubr.f32.gmra.mxu0 %v265
    %v967 = vpop.f32.mrf.mxu0
    %v968 = vadd.f32 0.0, %v967
    %v969 = vpop.f32.mrf.mxu0
    %970 = vdwg.mxu0
    %v972 = vsel %vm149, %v894, 0
    %974 = vmatprep.subr.mxu0 0.0
    %975 = vmatpush1.msra.mxu0 0.0
    %976 = vmatprep.subr.mxu0 0.0
    %977 = vmatpush1.msra.mxu0 0.0
    %978 = vmatprep.subr.mxu0 0.0
    %979 = vmatpush1.msra.mxu0 0.0
    %980 = vmatprep.subr.mxu0 0.0
    %981 = vmatpush1.msra.mxu0 0.0
    %982 = vmatprep.subr.mxu0 0.0
    %983 = vmatpush1.msra.mxu0 0.0
    %984 = vmatprep.subr.mxu0 0.0
    %985 = vmatpush1.msra.mxu0 0.0
    %986 = vmatprep.subr.mxu0 0.0
    %987 = vmatpush1.msra.mxu0 0.0
    %988 = vmatprep.subr.mxu0 0.0
    %989 = vmatpush1.msra.mxu0 0.0
    %990 = vmatprep.subr.mxu0 0.0
    %991 = vmatpush1.msra.mxu0 0.0
    %992 = vmatprep.subr.mxu0 0.0
    %993 = vmatpush1.msra.mxu0 0.0
    %994 = vmatprep.subr.mxu0 0.0
    %995 = vmatpush1.msra.mxu0 0.0
    %996 = vmatprep.subr.mxu0 0.0
    %997 = vmatpush1.msra.mxu0 0.0
    %998 = vmatprep.subr.mxu0 0.0
    %999 = vmatpush1.msra.mxu0 0.0
    %1000 = vmatprep.subr.mxu0 0.0
    %1001 = vmatpush1.msra.mxu0 %v897
    %1002 = vmatprep.subr.mxu0 0.0
    %1003 = vmatpush1.msra.mxu0 %v896
    %1004 = vmatprep.subr.mxu0 0.0
    %1005 = vmatpush1.msra.mxu0 %v895
    %1006 = vmatprep.subr.mxu0 0.0
    %1007 = vmatpush2.msra.mxu0 0.0
    %1008 = vmatprep.subr.mxu0 0.0
    %1009 = vmatpush2.msra.mxu0 0.0
    %1010 = vmatprep.subr.mxu0 0.0
    %1011 = vmatpush2.msra.mxu0 0.0
    %1012 = vmatprep.subr.mxu0 0.0
    %1013 = vmatpush2.msra.mxu0 0.0
    %1014 = vmatprep.subr.mxu0 0.0
    %1015 = vmatpush2.msra.mxu0 0.0
    %1016 = vmatprep.subr.mxu0 0.0
    %1017 = vmatpush2.msra.mxu0 0.0
    %1018 = vmatprep.subr.mxu0 0.0
    %1019 = vmatpush2.msra.mxu0 0.0
    %1020 = vmatprep.subr.mxu0 0.0
    %1021 = vmatpush2.msra.mxu0 0.0
    %1022 = vmatprep.subr.mxu0 0.0
    %1023 = vmatpush2.msra.mxu0 0.0
    %1024 = vmatprep.subr.mxu0 0.0
    %1025 = vmatpush2.msra.mxu0 0.0
    %1026 = vmatprep.subr.mxu0 0.0
    %1027 = vmatpush2.msra.mxu0 0.0
    %1028 = vmatprep.subr.mxu0 0.0
    %1029 = vmatpush2.msra.mxu0 0.0
    %1030 = vmatprep.subr.mxu0 0.0
    %1031 = vmatpush2.msra.mxu0 0.0
    %1032 = vmatprep.subr.mxu0 0.0
    %1033 = vmatpush2.msra.mxu0 0.0
    %1034 = vmatprep.subr.mxu0 0.0
    %1035 = vmatpush2.msra.mxu0 0.0
    %1036 = vmatprep.subr.mxu0 0.0
    %1037 = vmatpush2.msra.mxu0 0.0
    %1038 = vmatprep.mubr.f32.mxu0 0.0
    %1039 = vmatmul.mubr.f32.gmra.mxu0 %v972
    %v1040 = vpop.f32.mrf.mxu0
    %v1041 = vadd.f32 %v968, %v1040
    %v1042 = vpop.f32.mrf.mxu0
    %1043 = vdwg.mxu0
    %v1044 = vld [vmem:[%s20] sm:$0xff]
    %v1045 = vld [vmem:[%s20 + $0x8] sm:$0xff]
    %1046 = vmatprep.subr.mxu0 0.0
    %1047 = vmatpush1.msra.mxu0 0.0
    %1048 = vmatprep.subr.mxu0 0.0
    %1049 = vmatpush1.msra.mxu0 0.0
    %1050 = vmatprep.subr.mxu0 0.0
    %1051 = vmatpush1.msra.mxu0 0.0
    %1052 = vmatprep.subr.mxu0 0.0
    %1053 = vmatpush1.msra.mxu0 0.0
    %1054 = vmatprep.subr.mxu0 0.0
    %1055 = vmatpush1.msra.mxu0 0.0
    %1056 = vmatprep.subr.mxu0 0.0
    %1057 = vmatpush1.msra.mxu0 0.0
    %1058 = vmatprep.subr.mxu0 0.0
    %1059 = vmatpush1.msra.mxu0 0.0
    %1060 = vmatprep.subr.mxu0 0.0
    %1061 = vmatpush1.msra.mxu0 0.0
    %1062 = vmatprep.subr.mxu0 0.0
    %1063 = vmatpush1.msra.mxu0 0.0
    %1064 = vmatprep.subr.mxu0 0.0
    %1065 = vmatpush1.msra.mxu0 0.0
    %1066 = vmatprep.subr.mxu0 0.0
    %1067 = vmatpush1.msra.mxu0 0.0
    %1068 = vmatprep.subr.mxu0 0.0
    %1069 = vmatpush1.msra.mxu0 0.0
    %1070 = vmatprep.subr.mxu0 0.0
    %1071 = vmatpush1.msra.mxu0 0.0
    %1072 = vmatprep.subr.mxu0 0.0
    %1073 = vmatpush1.msra.mxu0 0.0
    %1074 = vmatprep.subr.mxu0 0.0
    %1075 = vmatpush1.msra.mxu0 %v1045
    %1076 = vmatprep.subr.mxu0 0.0
    %1077 = vmatpush1.msra.mxu0 %v1044
    %1078 = vmatprep.subr.mxu0 0.0
    %1079 = vmatpush2.msra.mxu0 0.0
    %1080 = vmatprep.subr.mxu0 0.0
    %1081 = vmatpush2.msra.mxu0 0.0
    %1082 = vmatprep.subr.mxu0 0.0
    %1083 = vmatpush2.msra.mxu0 0.0
    %1084 = vmatprep.subr.mxu0 0.0
    %1085 = vmatpush2.msra.mxu0 0.0
    %1086 = vmatprep.subr.mxu0 0.0
    %1087 = vmatpush2.msra.mxu0 0.0
    %1088 = vmatprep.subr.mxu0 0.0
    %1089 = vmatpush2.msra.mxu0 0.0
    %1090 = vmatprep.subr.mxu0 0.0
    %1091 = vmatpush2.msra.mxu0 0.0
    %1092 = vmatprep.subr.mxu0 0.0
    %1093 = vmatpush2.msra.mxu0 0.0
    %1094 = vmatprep.subr.mxu0 0.0
    %1095 = vmatpush2.msra.mxu0 0.0
    %1096 = vmatprep.subr.mxu0 0.0
    %1097 = vmatpush2.msra.mxu0 0.0
    %1098 = vmatprep.subr.mxu0 0.0
    %1099 = vmatpush2.msra.mxu0 0.0
    %1100 = vmatprep.subr.mxu0 0.0
    %1101 = vmatpush2.msra.mxu0 0.0
    %1102 = vmatprep.subr.mxu0 0.0
    %1103 = vmatpush2.msra.mxu0 0.0
    %1104 = vmatprep.subr.mxu0 0.0
    %1105 = vmatpush2.msra.mxu0 0.0
    %1106 = vmatprep.subr.mxu0 0.0
    %1107 = vmatpush2.msra.mxu0 0.0
    %1108 = vmatprep.subr.mxu0 0.0
    %1109 = vmatpush2.msra.mxu0 0.0
    %1110 = vmatprep.mubr.f32.mxu0 0.0
    %1111 = vmatmul.mubr.f32.gmra.mxu0 %v77
    %v1112 = vpop.f32.mrf.mxu0
    %v1113 = vadd.f32 0.0, %v1112
    %v1114 = vpop.f32.mrf.mxu0
    %1115 = vdwg.mxu0
    %v1116 = vadd.f32 %v1041, %v1113
    %v1117 = vld [vmem:[%s21] sm:$0x1]
    %v1119 = vlaneseq
    %v1120 = vshrl.u32 %v1119, 7
    %v1121 = vsub.s32 0, %v1120
    %v1122 = vrot.slane %v1117, %v1121
    %v1124 = vadd.f32 %v1116, %v1122
    %vm1125 = vcmask 64512
    %1126 = vst.msk [vmem:[#allocation2] sm:$0xff] %vm1125, %v1124
    // Predicated region
    $region90: #{fully_connected_with_skips.1} parent=1 // pred_check
      _
    $region91: #{fully_connected_with_skips.1} parent=1 // pred_check_branch
      %1128 = sbr.rel (0) target = $region93
    $region92: #{fully_connected_with_skips.1} parent=1 // pred_region
      %s1130 = ssub.s32 128, 128
      %1131 = vsyncadd [#allocation3], %s1130
      %s1133 = sshll.u32 [#allocation2], 4
      %s1134 = int_to_ptr.vmem [resolvable:$true] %s1133
      %1136 = dma.vmem_to_hbm [thread:$0]  %s1134, 128, %s22, [#allocation3]
    $region93: #{fully_connected_with_skips.1} parent=1 // pred_fallthru
      _
    // Predicated region
    $region94: #{fully_connected_with_skips.1} parent=1 // pred_check
      _
    $region95: #{fully_connected_with_skips.1} parent=1 // pred_check_branch
      %1138 = sbr.rel (0) target = $region97
    $region96: #{fully_connected_with_skips.1} parent=1 // pred_region
      %1139 = dma.done [#allocation3], 128
    $region97: #{fully_connected_with_skips.1} parent=1 // pred_fallthru
      _
    %1140 = vsyncpa [#allocation3], 1

</llo_original>
